<compile_context>
chip_gen: v7x
topology: tpu7x:2x2x1
jax: 0.10.0
libtpu: 0.0.40
codegen_flags: <defaults>
</compile_context>

<pallas_src>
import functools
from functools import lru_cache

import numpy as np
import jax
import jax.numpy as jnp
from jax.experimental import pallas as pl
from jax.experimental.pallas import tpu as pltpu


# ----------------------------------------------------------------------------
# Pallas kernels
# ----------------------------------------------------------------------------
def _upsample_unc_kernel(x_ref, ry_ref, rxT_ref, o_ref, u_ref, *,
                         planes, hin, win, hout, wout):
    # x_ref:   (P, Hin, Win)    P = (batch chunk) * 4 channels
    # ry_ref:  (Hout, Hin)      bilinear x2 row operator (align_corners=True)
    # rxT_ref: (Win, Wout)      bilinear x2 column operator, transposed
    # o_ref:   (P, Hout, Wout)  upsampled planes
    # u_ref:   (P//4, Hout, Wout)  -(top1 - top2) over each image's 4 channels
    x = x_ref[...]

    # Width pass: one MXU matmul over the whole (P*Hin, Win) slab.
    t = jnp.dot(x.reshape(planes * hin, win), rxT_ref[...],
                preferred_element_type=jnp.float32)           # (P*Hin, Wout)
    t = t.reshape(planes, hin, wout)

    # Height pass: batched matmul, Ry broadcast over planes (avoids transposes/relayouts).
    ry_b = jnp.broadcast_to(ry_ref[...][None], (planes, hout, hin))
    y = jax.lax.dot_general(
        ry_b, t,
        dimension_numbers=(((2,), (1,)), ((0,), (0,))),
        preferred_element_type=jnp.float32)                   # (P, Hout, Wout)
    o_ref[...] = y.astype(o_ref.dtype)

    # Fused uncertainty: -(top1 - top2) over the 4 channels (max/min network on the VPU).
    y4 = y.reshape(planes // 4, 4, hout, wout)
    a = y4[:, 0]
    b = y4[:, 1]
    c = y4[:, 2]
    d = y4[:, 3]
    p1 = jnp.maximum(a, b)
    q1 = jnp.minimum(a, b)
    p2 = jnp.maximum(c, d)
    q2 = jnp.minimum(c, d)
    top1 = jnp.maximum(p1, p2)
    top2 = jnp.maximum(jnp.minimum(p1, p2), jnp.where(p1 >= p2, q1, q2))
    u_ref[...] = (top2 - top1).astype(u_ref.dtype)


def _mlp_kernel(f_ref, w_ref, b_ref, o_ref):
    # f_ref: (Cin, B*N), w_ref: (Cout, Cin), b_ref: (Cout, 1), o_ref: (Cout, B*N)
    y = jnp.dot(w_ref[...], f_ref[...], preferred_element_type=jnp.float32) + b_ref[...]
    o_ref[...] = y.astype(o_ref.dtype)


# ----------------------------------------------------------------------------
# Interpolation operators (host-side constants, cached per size)
# ----------------------------------------------------------------------------
@lru_cache(maxsize=None)
def _interp_matrix_np(out_size, in_size):
    """(out_size, in_size) bilinear interpolation matrix, align_corners=True."""
    if in_size == 1:
        return np.ones((out_size, 1), np.float32)
    if out_size == 1:
        m = np.zeros((1, in_size), np.float32)
        m[0, 0] = 1.0
        return m
    o = np.arange(out_size, dtype=np.float64)
    src = o * (in_size - 1) / (out_size - 1)
    i0 = np.clip(np.floor(src).astype(np.int64), 0, in_size - 2)
    w1 = src - i0
    cols = np.arange(in_size)[None, :]
    m = ((cols == i0[:, None]) * (1.0 - w1)[:, None]
         + (cols == (i0 + 1)[:, None]) * w1[:, None])
    return m.astype(np.float32)


@lru_cache(maxsize=None)
def _interp_operators(hin, win):
    ry = jnp.asarray(_interp_matrix_np(2 * hin, hin))          # (Hout, Hin)
    rxT = jnp.asarray(_interp_matrix_np(2 * win, win).T)       # (Win, Wout)
    return ry, rxT


# ----------------------------------------------------------------------------
# Pallas wrappers
# ----------------------------------------------------------------------------
def upsample2x_and_uncertainty(x):
    """Fused F.interpolate(x2, bilinear, align_corners=True) + per-pixel -(top1-top2)
    channel uncertainty of the upsampled result.  x: (B, 4, Hin, Win) ->
    (out (B,4,Hout,Wout), unc (B,Hout,Wout))."""
    B, C, Hin, Win = x.shape
    assert C == 4
    Hout, Wout = 2 * Hin, 2 * Win
    ry, rxT = _interp_operators(Hin, Win)

    # 2-way batch-chunked "parallel" grid so v7x's two TensorCores can split the work.
    g = 2 if (B % 2 == 0 and B >= 2) else 1
    Bc = B // g
    planes = Bc * 4

    xf = x.reshape(B * 4, Hin, Win).astype(jnp.float32)
    kernel = functools.partial(_upsample_unc_kernel,
                               planes=planes, hin=Hin, win=Win, hout=Hout, wout=Wout)
    out, unc = pl.pallas_call(
        kernel,
        out_shape=(jax.ShapeDtypeStruct((B * 4, Hout, Wout), jnp.float32),
                   jax.ShapeDtypeStruct((B, Hout, Wout), jnp.float32)),
        grid=(g,),
        in_specs=[
            pl.BlockSpec((planes, Hin, Win), lambda i: (i, 0, 0)),
            pl.BlockSpec((Hout, Hin), lambda i: (0, 0)),
            pl.BlockSpec((Win, Wout), lambda i: (0, 0)),
        ],
        out_specs=(
            pl.BlockSpec((planes, Hout, Wout), lambda i: (i, 0, 0)),
            pl.BlockSpec((Bc, Hout, Wout), lambda i: (i, 0, 0)),
        ),
        compiler_params=pltpu.CompilerParams(dimension_semantics=("parallel",)),
        # TODO(synk): at production resolutions, tile over output rows and set
        # vmem_limit_bytes so whole-plane blocks fit v7x's 64 MiB VMEM.
    )(xf, ry, rxT)
    return out.reshape(B, 4, Hout, Wout), unc


def mlp_conv1d_pallas(feat, w, b):
    """nn.Conv1d(Cin, Cout, kernel_size=1): feat (B, Cin, N) -> (B, Cout, N).
    Batch folded into the lane dim: single grid step computing W @ (Cin, B*N) + b."""
    B, Cin, N = feat.shape
    Cout = w.shape[0]
    f2 = jnp.transpose(feat, (1, 0, 2)).reshape(Cin, B * N).astype(jnp.float32)
    y2 = pl.pallas_call(
        _mlp_kernel,
        out_shape=jax.ShapeDtypeStruct((Cout, B * N), jnp.float32),
        grid=(1,),
        in_specs=[
            pl.BlockSpec((Cin, B * N), lambda i: (0, 0)),
            pl.BlockSpec((Cout, Cin), lambda i: (0, 0)),
            pl.BlockSpec((Cout, 1), lambda i: (0, 0)),
        ],
        out_specs=pl.BlockSpec((Cout, B * N), lambda i: (0, 0)),
        compiler_params=pltpu.CompilerParams(dimension_semantics=("arbitrary",)),
    )(f2, w.astype(jnp.float32), b.reshape(Cout, 1).astype(jnp.float32))
    return y2.reshape(Cout, B, N).transpose(1, 0, 2)


# ----------------------------------------------------------------------------
# JAX glue: point_sample / sampling points / scatter
# ----------------------------------------------------------------------------
def point_sample(inp, points):
    """torch point_sample: F.grid_sample(inp, 2*points-1, bilinear, align_corners=False,
    padding_mode='zeros'); points (B, N, 2) with [...,0]=x, [...,1]=y in [0, 1]."""
    B, C, H, W = inp.shape
    N = points.shape[1]
    x = points[..., 0] * W - 0.5
    y = points[..., 1] * H - 0.5
    x0 = jnp.floor(x)
    y0 = jnp.floor(y)
    x1 = x0 + 1.0
    y1 = y0 + 1.0
    wx1 = x - x0
    wx0 = 1.0 - wx1
    wy1 = y - y0
    wy0 = 1.0 - wy1
    flat = inp.reshape(B, C, H * W)

    def gather(ix, iy):
        valid = (ix >= 0) & (ix <= W - 1) & (iy >= 0) & (iy <= H - 1)
        ixc = jnp.clip(ix, 0, W - 1).astype(jnp.int32)
        iyc = jnp.clip(iy, 0, H - 1).astype(jnp.int32)
        idx = iyc * W + ixc                                     # (B, N)
        vals = jnp.take_along_axis(flat, jnp.broadcast_to(idx[:, None, :], (B, C, N)), axis=2)
        return vals * valid[:, None, :].astype(inp.dtype)

    out = (gather(x0, y0) * (wx0 * wy0)[:, None, :]
           + gather(x1, y0) * (wx1 * wy0)[:, None, :]
           + gather(x0, y1) * (wx0 * wy1)[:, None, :]
           + gather(x1, y1) * (wx1 * wy1)[:, None, :])
    return out


def sampling_points_from_uncertainty(unc_flat, H, W, num_points):
    """Inference branch of sampling_points: pick N most-uncertain pixels."""
    N = min(H * W, num_points)
    _, idx = jax.lax.top_k(unc_flat, N)                         # (B, N)
    w_step = 1.0 / W
    h_step = 1.0 / H
    px = w_step / 2.0 + (idx % W).astype(jnp.float32) * w_step
    py = h_step / 2.0 + (idx // W).astype(jnp.float32) * h_step
    points = jnp.stack([px, py], axis=-1)                       # (B, N, 2), [...,0]=x, [...,1]=y
    return idx, points


def scatter_points(out, idx, rend):
    """out.reshape(B,C,-1).scatter_(2, idx.expand(-1,C,-1), rend).view(B,C,H,W)."""
    B, C, H, W = out.shape
    out_flat = out.reshape(B, C, H * W)
    bidx = jnp.arange(B)[:, None, None]
    cidx = jnp.arange(C)[None, :, None]
    out_flat = out_flat.at[bidx, cidx, idx[:, None, :]].set(rend)
    return out_flat.reshape(B, C, H, W)


# ----------------------------------------------------------------------------
# Module
# ----------------------------------------------------------------------------
class PointRendRefinerPallas:
    def __init__(self, hidden_channels=16, beta=0.75, key=jax.random.PRNGKey(42)):
        self.beta = beta
        self.hidden_channels = hidden_channels
        kw, kb = jax.random.split(key)
        cin = hidden_channels + 4
        # deterministic synthetic init for nn.Conv1d(hidden_channels + 4, 4, 1)
        bound = 1.0 / jnp.sqrt(cin)
        self.w = jax.random.uniform(kw, (4, cin), jnp.float32, -bound, bound)
        self.b = jax.random.uniform(kb, (4,), jnp.float32, -bound, bound)
        self._jit_single = jax.jit(self._forward_single_frame)
        # TODO(synk): training-mode random point sampling (sampling_points training branch)
        # is not implemented; inference (eval) semantics only.
        # TODO(synk): the scatter writeback could be fused into the MLP kernel via
        # PrefetchScalarGridSpec + input_output_aliases; kept in XLA for robustness.

    def _forward_single_frame(self, src, hid, fgr, pha):
        out = jnp.concatenate([fgr, pha], axis=1)               # (B, 4, h, w)
        while out.shape[-2:] != src.shape[-2:]:
            out, unc = upsample2x_and_uncertainty(out)          # fused Pallas kernel
            B, C, H, W = out.shape
            num_points = (W // 8) * (H // 8)
            if num_points > 0:
                points_idx, points = sampling_points_from_uncertainty(
                    unc.reshape(B, H * W), H, W, num_points)
                coarse = point_sample(out, points)              # (B, 4, N)
                fine = point_sample(hid, points)                # (B, hidden, N)
                feature_representation = jnp.concatenate([coarse, fine], axis=1)
                rend = mlp_conv1d_pallas(feature_representation, self.w, self.b)
                out = scatter_points(out, points_idx, rend)
        fgr_out, pha_out = out[:, :3], out[:, 3:]
        return fgr_out, pha_out

    def forward_single_frame(self, src, hid, fgr, pha):
        return self._jit_single(src, hid, fgr, pha)

    def forward_time_series(self, src, hid, fgr, pha):
        B, T = src.shape[:2]
        flat = lambda x: x.reshape((B * T,) + x.shape[2:])
        fgr_o, pha_o = self.forward_single_frame(flat(src), flat(hid), flat(fgr), flat(pha))
        unflat = lambda x: x.reshape((B, T) + x.shape[1:])
        return unflat(fgr_o), unflat(pha_o)

    def __call__(self, src, hid, fgr, pha):
        if src.ndim == 5:
            return self.forward_time_series(src, hid, fgr, pha)
        return self.forward_single_frame(src, hid, fgr, pha)


# ----------------------------------------------------------------------------
# Demo
# ----------------------------------------------------------------------------
if __name__ == "__main__":
    key = jax.random.PRNGKey(0)
    k1, k2, k3, k4, km = jax.random.split(key, 5)
    B = 2
    hidden_channels = 16
    # coarse fgr/pha at 1/4 resolution of src -> refinement loop runs twice (8->16->32)
    src = jax.random.normal(k1, (B, 3, 32, 32), jnp.float32)
    hid = jax.random.normal(k2, (B, hidden_channels, 8, 8), jnp.float32)
    fgr = jax.random.uniform(k3, (B, 3, 8, 8), jnp.float32)
    pha = jax.random.uniform(k4, (B, 1, 8, 8), jnp.float32)

    model = PointRendRefinerPallas(hidden_channels=hidden_channels, key=km)
    fgr_out, pha_out = model(src, hid, fgr, pha)
    jax.block_until_ready((fgr_out, pha_out))

    assert fgr_out.shape == (B, 3, 32, 32), fgr_out.shape
    assert pha_out.shape == (B, 1, 32, 32), pha_out.shape
    assert bool(jnp.all(jnp.isfinite(fgr_out))) and bool(jnp.all(jnp.isfinite(pha_out)))
    print("KERNEL_OK")
</pallas_src>

<mosaic_0001>
module attributes {stable_mosaic.version = 11 : i64} {
  func.func @_upsample_unc_kernel(%arg0: i32, %arg1: memref<4x8x8xf32, #tpu.memory_space<vmem>>, %arg2: memref<16x8xf32, #tpu.memory_space<vmem>>, %arg3: memref<8x16xf32, #tpu.memory_space<vmem>>, %arg4: memref<4x16x16xf32, #tpu.memory_space<vmem>>, %arg5: memref<1x16x16xf32, #tpu.memory_space<vmem>>) attributes {dimension_semantics = [#tpu.dimension_semantics<parallel>], iteration_bounds = array<i64: 2>, scalar_prefetch = 0 : i64, scratch_operands = 0 : i64, tpu.core_type = #tpu.core_type<tc>, window_params = [{transform_indices = @transform_0, window_bounds = array<i64: 4, 8, 8>}, {pipeline_mode = #tpu.pipeline_mode<synchronous>, transform_indices = @transform_1, window_bounds = array<i64: 16, 8>}, {pipeline_mode = #tpu.pipeline_mode<synchronous>, transform_indices = @transform_2, window_bounds = array<i64: 8, 16>}, {transform_indices = @transform_3, window_bounds = array<i64: 4, 16, 16>}, {transform_indices = @transform_4, window_bounds = array<i64: 1, 16, 16>}]} {
    %c0 = arith.constant 0 : index
    %c0_0 = arith.constant 0 : index
    %c0_1 = arith.constant 0 : index
    %0 = vector.load %arg1[%c0, %c0_0, %c0_1] : memref<4x8x8xf32, #tpu.memory_space<vmem>>, vector<4x8x8xf32>
    %1 = vector.shape_cast %0 : vector<4x8x8xf32> to vector<32x8xf32>
    %c0_2 = arith.constant 0 : index
    %c0_3 = arith.constant 0 : index
    %2 = vector.load %arg3[%c0_2, %c0_3] : memref<8x16xf32, #tpu.memory_space<vmem>>, vector<8x16xf32>
    %cst = arith.constant dense<0.000000e+00> : vector<32x16xf32>
    %3 = tpu.matmul %1, %2, %cst {dimension_numbers = #tpu.dot_dimension_numbers<[1], [0], [0], [1], [0, 0, 1, 1], [], []>} : vector<32x8xf32>, vector<8x16xf32>, vector<32x16xf32> -> vector<32x16xf32>
    %4 = vector.shape_cast %3 : vector<32x16xf32> to vector<4x8x16xf32>
    %c0_4 = arith.constant 0 : index
    %c0_5 = arith.constant 0 : index
    %5 = vector.load %arg2[%c0_4, %c0_5] : memref<16x8xf32, #tpu.memory_space<vmem>>, vector<16x8xf32>
    %6 = vector.shape_cast %5 : vector<16x8xf32> to vector<1x16x8xf32>
    %7 = vector.shape_cast %6 : vector<1x16x8xf32> to vector<1x16x8xf32>
    %8 = vector.broadcast %7 : vector<1x16x8xf32> to vector<4x16x8xf32>
    %cst_6 = arith.constant dense<0.000000e+00> : vector<4x16x16xf32>
    %9 = tpu.matmul %8, %4, %cst_6 {dimension_numbers = #tpu.dot_dimension_numbers<[2], [1], [1], [2], [0, 0, 0, 1, 1, 2], [0], [0]>} : vector<4x16x8xf32>, vector<4x8x16xf32>, vector<4x16x16xf32> -> vector<4x16x16xf32>
    %c0_7 = arith.constant 0 : index
    %c0_8 = arith.constant 0 : index
    %c0_9 = arith.constant 0 : index
    %10 = vector.load %arg4[%c0_7, %c0_8, %c0_9] : memref<4x16x16xf32, #tpu.memory_space<vmem>>, vector<4x16x16xf32>
    tpu.vector_store %arg4[%c0_7, %c0_8, %c0_9], %9 {strides = array<i32>} : memref<4x16x16xf32, #tpu.memory_space<vmem>>, vector<4x16x16xf32>,
    %11 = vector.shape_cast %9 : vector<4x16x16xf32> to vector<1x4x16x16xf32>
    %12 = vector.extract_strided_slice %11 {offsets = [0, 0, 0, 0], sizes = [1, 1, 16, 16], strides = [1, 1, 1, 1]} : vector<1x4x16x16xf32> to vector<1x1x16x16xf32>
    %13 = vector.shape_cast %12 : vector<1x1x16x16xf32> to vector<1x16x16xf32>
    %14 = vector.extract_strided_slice %11 {offsets = [0, 1, 0, 0], sizes = [1, 1, 16, 16], strides = [1, 1, 1, 1]} : vector<1x4x16x16xf32> to vector<1x1x16x16xf32>
    %15 = vector.shape_cast %14 : vector<1x1x16x16xf32> to vector<1x16x16xf32>
    %16 = vector.extract_strided_slice %11 {offsets = [0, 2, 0, 0], sizes = [1, 1, 16, 16], strides = [1, 1, 1, 1]} : vector<1x4x16x16xf32> to vector<1x1x16x16xf32>
    %17 = vector.shape_cast %16 : vector<1x1x16x16xf32> to vector<1x16x16xf32>
    %18 = vector.extract_strided_slice %11 {offsets = [0, 3, 0, 0], sizes = [1, 1, 16, 16], strides = [1, 1, 1, 1]} : vector<1x4x16x16xf32> to vector<1x1x16x16xf32>
    %19 = vector.shape_cast %18 : vector<1x1x16x16xf32> to vector<1x16x16xf32>
    %20 = arith.maximumf %13, %15 : vector<1x16x16xf32>
    %21 = arith.minimumf %13, %15 : vector<1x16x16xf32>
    %22 = arith.maximumf %17, %19 : vector<1x16x16xf32>
    %23 = arith.minimumf %17, %19 : vector<1x16x16xf32>
    %24 = arith.maximumf %20, %22 : vector<1x16x16xf32>
    %25 = arith.minimumf %20, %22 : vector<1x16x16xf32>
    %26 = arith.cmpf oge, %20, %22 : vector<1x16x16xf32>
    %27 = arith.select %26, %21, %23 : vector<1x16x16xi1>, vector<1x16x16xf32>
    %28 = arith.maximumf %25, %27 : vector<1x16x16xf32>
    %29 = arith.subf %28, %24 : vector<1x16x16xf32>
    %c0_10 = arith.constant 0 : index
    %c0_11 = arith.constant 0 : index
    %c0_12 = arith.constant 0 : index
    %30 = vector.load %arg5[%c0_10, %c0_11, %c0_12] : memref<1x16x16xf32, #tpu.memory_space<vmem>>, vector<1x16x16xf32>
    tpu.vector_store %arg5[%c0_10, %c0_11, %c0_12], %29 {strides = array<i32>} : memref<1x16x16xf32, #tpu.memory_space<vmem>>, vector<1x16x16xf32>,
    return
  }
  func.func @transform_0(%arg0: i32) -> (i32, i32, i32) {
    %c0_i32 = arith.constant 0 : i32
    %c0_i32_0 = arith.constant 0 : i32
    %c0_i32_1 = arith.constant 0 : i32
    return %arg0, %c0_i32, %c0_i32_0 : i32, i32, i32
  }
  func.func @transform_1(%arg0: i32) -> (i32, i32) {
    %c0_i32 = arith.constant 0 : i32
    %c0_i32_0 = arith.constant 0 : i32
    %c0_i32_1 = arith.constant 0 : i32
    return %c0_i32, %c0_i32_0 : i32, i32
  }
  func.func @transform_2(%arg0: i32) -> (i32, i32) {
    %c0_i32 = arith.constant 0 : i32
    %c0_i32_0 = arith.constant 0 : i32
    %c0_i32_1 = arith.constant 0 : i32
    return %c0_i32, %c0_i32_0 : i32, i32
  }
  func.func @transform_3(%arg0: i32) -> (i32, i32, i32) {
    %c0_i32 = arith.constant 0 : i32
    %c0_i32_0 = arith.constant 0 : i32
    %c0_i32_1 = arith.constant 0 : i32
    return %arg0, %c0_i32, %c0_i32_0 : i32, i32, i32
  }
  func.func @transform_4(%arg0: i32) -> (i32, i32, i32) {
    %c0_i32 = arith.constant 0 : i32
    %c0_i32_0 = arith.constant 0 : i32
    %c0_i32_1 = arith.constant 0 : i32
    return %arg0, %c0_i32, %c0_i32_0 : i32, i32, i32
  }
}

module attributes {stable_mosaic.version = 11 : i64} {
  func.func @_mlp_kernel(%arg0: i32, %arg1: memref<20x8xf32, #tpu.memory_space<vmem>>, %arg2: memref<4x20xf32, #tpu.memory_space<vmem>>, %arg3: memref<4x1xf32, #tpu.memory_space<vmem>>, %arg4: memref<4x8xf32, #tpu.memory_space<vmem>>) attributes {dimension_semantics = [#tpu.dimension_semantics<arbitrary>], iteration_bounds = array<i64: 1>, scalar_prefetch = 0 : i64, scratch_operands = 0 : i64, tpu.core_type = #tpu.core_type<tc>, window_params = [{pipeline_mode = #tpu.pipeline_mode<synchronous>, transform_indices = @transform_0, window_bounds = array<i64: 20, 8>}, {pipeline_mode = #tpu.pipeline_mode<synchronous>, transform_indices = @transform_1, window_bounds = array<i64: 4, 20>}, {pipeline_mode = #tpu.pipeline_mode<synchronous>, transform_indices = @transform_2, window_bounds = array<i64: 4, 1>}, {pipeline_mode = #tpu.pipeline_mode<synchronous>, transform_indices = @transform_3, window_bounds = array<i64: 4, 8>}]} {
    %c0 = arith.constant 0 : index
    %c0_0 = arith.constant 0 : index
    %0 = vector.load %arg2[%c0, %c0_0] : memref<4x20xf32, #tpu.memory_space<vmem>>, vector<4x20xf32>
    %c0_1 = arith.constant 0 : index
    %c0_2 = arith.constant 0 : index
    %1 = vector.load %arg1[%c0_1, %c0_2] : memref<20x8xf32, #tpu.memory_space<vmem>>, vector<20x8xf32>
    %cst = arith.constant dense<0.000000e+00> : vector<4x8xf32>
    %2 = tpu.matmul %0, %1, %cst {dimension_numbers = #tpu.dot_dimension_numbers<[1], [0], [0], [1], [0, 0, 1, 1], [], []>} : vector<4x20xf32>, vector<20x8xf32>, vector<4x8xf32> -> vector<4x8xf32>
    %c0_3 = arith.constant 0 : index
    %c0_4 = arith.constant 0 : index
    %3 = vector.load %arg3[%c0_3, %c0_4] : memref<4x1xf32, #tpu.memory_space<vmem>>, vector<4x1xf32>
    %4 = vector.broadcast %3 : vector<4x1xf32> to vector<4x8xf32>
    %5 = arith.addf %2, %4 : vector<4x8xf32>
    %c0_5 = arith.constant 0 : index
    %c0_6 = arith.constant 0 : index
    %6 = vector.load %arg4[%c0_5, %c0_6] : memref<4x8xf32, #tpu.memory_space<vmem>>, vector<4x8xf32>
    tpu.vector_store %arg4[%c0_5, %c0_6], %5 {strides = array<i32>} : memref<4x8xf32, #tpu.memory_space<vmem>>, vector<4x8xf32>,
    return
  }
  func.func @transform_0(%arg0: i32) -> (i32, i32) {
    %c0_i32 = arith.constant 0 : i32
    %c0_i32_0 = arith.constant 0 : i32
    %c0_i32_1 = arith.constant 0 : i32
    return %c0_i32, %c0_i32_0 : i32, i32
  }
  func.func @transform_1(%arg0: i32) -> (i32, i32) {
    %c0_i32 = arith.constant 0 : i32
    %c0_i32_0 = arith.constant 0 : i32
    %c0_i32_1 = arith.constant 0 : i32
    return %c0_i32, %c0_i32_0 : i32, i32
  }
  func.func @transform_2(%arg0: i32) -> (i32, i32) {
    %c0_i32 = arith.constant 0 : i32
    %c0_i32_0 = arith.constant 0 : i32
    %c0_i32_1 = arith.constant 0 : i32
    return %c0_i32, %c0_i32_0 : i32, i32
  }
  func.func @transform_3(%arg0: i32) -> (i32, i32) {
    %c0_i32 = arith.constant 0 : i32
    %c0_i32_0 = arith.constant 0 : i32
    %c0_i32_1 = arith.constant 0 : i32
    return %c0_i32, %c0_i32_0 : i32, i32
  }
}

module attributes {stable_mosaic.version = 11 : i64} {
  func.func @_upsample_unc_kernel(%arg0: i32, %arg1: memref<4x16x16xf32, #tpu.memory_space<vmem>>, %arg2: memref<32x16xf32, #tpu.memory_space<vmem>>, %arg3: memref<16x32xf32, #tpu.memory_space<vmem>>, %arg4: memref<4x32x32xf32, #tpu.memory_space<vmem>>, %arg5: memref<1x32x32xf32, #tpu.memory_space<vmem>>) attributes {dimension_semantics = [#tpu.dimension_semantics<parallel>], iteration_bounds = array<i64: 2>, scalar_prefetch = 0 : i64, scratch_operands = 0 : i64, tpu.core_type = #tpu.core_type<tc>, window_params = [{transform_indices = @transform_0, window_bounds = array<i64: 4, 16, 16>}, {pipeline_mode = #tpu.pipeline_mode<synchronous>, transform_indices = @transform_1, window_bounds = array<i64: 32, 16>}, {pipeline_mode = #tpu.pipeline_mode<synchronous>, transform_indices = @transform_2, window_bounds = array<i64: 16, 32>}, {transform_indices = @transform_3, window_bounds = array<i64: 4, 32, 32>}, {transform_indices = @transform_4, window_bounds = array<i64: 1, 32, 32>}]} {
    %c0 = arith.constant 0 : index
    %c0_0 = arith.constant 0 : index
    %c0_1 = arith.constant 0 : index
    %0 = vector.load %arg1[%c0, %c0_0, %c0_1] : memref<4x16x16xf32, #tpu.memory_space<vmem>>, vector<4x16x16xf32>
    %1 = vector.shape_cast %0 : vector<4x16x16xf32> to vector<64x16xf32>
    %c0_2 = arith.constant 0 : index
    %c0_3 = arith.constant 0 : index
    %2 = vector.load %arg3[%c0_2, %c0_3] : memref<16x32xf32, #tpu.memory_space<vmem>>, vector<16x32xf32>
    %cst = arith.constant dense<0.000000e+00> : vector<64x32xf32>
    %3 = tpu.matmul %1, %2, %cst {dimension_numbers = #tpu.dot_dimension_numbers<[1], [0], [0], [1], [0, 0, 1, 1], [], []>} : vector<64x16xf32>, vector<16x32xf32>, vector<64x32xf32> -> vector<64x32xf32>
    %4 = vector.shape_cast %3 : vector<64x32xf32> to vector<4x16x32xf32>
    %c0_4 = arith.constant 0 : index
    %c0_5 = arith.constant 0 : index
    %5 = vector.load %arg2[%c0_4, %c0_5] : memref<32x16xf32, #tpu.memory_space<vmem>>, vector<32x16xf32>
    %6 = vector.shape_cast %5 : vector<32x16xf32> to vector<1x32x16xf32>
    %7 = vector.shape_cast %6 : vector<1x32x16xf32> to vector<1x32x16xf32>
    %8 = vector.broadcast %7 : vector<1x32x16xf32> to vector<4x32x16xf32>
    %cst_6 = arith.constant dense<0.000000e+00> : vector<4x32x32xf32>
    %9 = tpu.matmul %8, %4, %cst_6 {dimension_numbers = #tpu.dot_dimension_numbers<[2], [1], [1], [2], [0, 0, 0, 1, 1, 2], [0], [0]>} : vector<4x32x16xf32>, vector<4x16x32xf32>, vector<4x32x32xf32> -> vector<4x32x32xf32>
    %c0_7 = arith.constant 0 : index
    %c0_8 = arith.constant 0 : index
    %c0_9 = arith.constant 0 : index
    %10 = vector.load %arg4[%c0_7, %c0_8, %c0_9] : memref<4x32x32xf32, #tpu.memory_space<vmem>>, vector<4x32x32xf32>
    tpu.vector_store %arg4[%c0_7, %c0_8, %c0_9], %9 {strides = array<i32>} : memref<4x32x32xf32, #tpu.memory_space<vmem>>, vector<4x32x32xf32>,
    %11 = vector.shape_cast %9 : vector<4x32x32xf32> to vector<1x4x32x32xf32>
    %12 = vector.extract_strided_slice %11 {offsets = [0, 0, 0, 0], sizes = [1, 1, 32, 32], strides = [1, 1, 1, 1]} : vector<1x4x32x32xf32> to vector<1x1x32x32xf32>
    %13 = vector.shape_cast %12 : vector<1x1x32x32xf32> to vector<1x32x32xf32>
    %14 = vector.extract_strided_slice %11 {offsets = [0, 1, 0, 0], sizes = [1, 1, 32, 32], strides = [1, 1, 1, 1]} : vector<1x4x32x32xf32> to vector<1x1x32x32xf32>
    %15 = vector.shape_cast %14 : vector<1x1x32x32xf32> to vector<1x32x32xf32>
    %16 = vector.extract_strided_slice %11 {offsets = [0, 2, 0, 0], sizes = [1, 1, 32, 32], strides = [1, 1, 1, 1]} : vector<1x4x32x32xf32> to vector<1x1x32x32xf32>
    %17 = vector.shape_cast %16 : vector<1x1x32x32xf32> to vector<1x32x32xf32>
    %18 = vector.extract_strided_slice %11 {offsets = [0, 3, 0, 0], sizes = [1, 1, 32, 32], strides = [1, 1, 1, 1]} : vector<1x4x32x32xf32> to vector<1x1x32x32xf32>
    %19 = vector.shape_cast %18 : vector<1x1x32x32xf32> to vector<1x32x32xf32>
    %20 = arith.maximumf %13, %15 : vector<1x32x32xf32>
    %21 = arith.minimumf %13, %15 : vector<1x32x32xf32>
    %22 = arith.maximumf %17, %19 : vector<1x32x32xf32>
    %23 = arith.minimumf %17, %19 : vector<1x32x32xf32>
    %24 = arith.maximumf %20, %22 : vector<1x32x32xf32>
    %25 = arith.minimumf %20, %22 : vector<1x32x32xf32>
    %26 = arith.cmpf oge, %20, %22 : vector<1x32x32xf32>
    %27 = arith.select %26, %21, %23 : vector<1x32x32xi1>, vector<1x32x32xf32>
    %28 = arith.maximumf %25, %27 : vector<1x32x32xf32>
    %29 = arith.subf %28, %24 : vector<1x32x32xf32>
    %c0_10 = arith.constant 0 : index
    %c0_11 = arith.constant 0 : index
    %c0_12 = arith.constant 0 : index
    %30 = vector.load %arg5[%c0_10, %c0_11, %c0_12] : memref<1x32x32xf32, #tpu.memory_space<vmem>>, vector<1x32x32xf32>
    tpu.vector_store %arg5[%c0_10, %c0_11, %c0_12], %29 {strides = array<i32>} : memref<1x32x32xf32, #tpu.memory_space<vmem>>, vector<1x32x32xf32>,
    return
  }
  func.func @transform_0(%arg0: i32) -> (i32, i32, i32) {
    %c0_i32 = arith.constant 0 : i32
    %c0_i32_0 = arith.constant 0 : i32
    %c0_i32_1 = arith.constant 0 : i32
    return %arg0, %c0_i32, %c0_i32_0 : i32, i32, i32
  }
  func.func @transform_1(%arg0: i32) -> (i32, i32) {
    %c0_i32 = arith.constant 0 : i32
    %c0_i32_0 = arith.constant 0 : i32
    %c0_i32_1 = arith.constant 0 : i32
    return %c0_i32, %c0_i32_0 : i32, i32
  }
  func.func @transform_2(%arg0: i32) -> (i32, i32) {
    %c0_i32 = arith.constant 0 : i32
    %c0_i32_0 = arith.constant 0 : i32
    %c0_i32_1 = arith.constant 0 : i32
    return %c0_i32, %c0_i32_0 : i32, i32
  }
  func.func @transform_3(%arg0: i32) -> (i32, i32, i32) {
    %c0_i32 = arith.constant 0 : i32
    %c0_i32_0 = arith.constant 0 : i32
    %c0_i32_1 = arith.constant 0 : i32
    return %arg0, %c0_i32, %c0_i32_0 : i32, i32, i32
  }
  func.func @transform_4(%arg0: i32) -> (i32, i32, i32) {
    %c0_i32 = arith.constant 0 : i32
    %c0_i32_0 = arith.constant 0 : i32
    %c0_i32_1 = arith.constant 0 : i32
    return %arg0, %c0_i32, %c0_i32_0 : i32, i32, i32
  }
}

module attributes {stable_mosaic.version = 11 : i64} {
  func.func @_mlp_kernel(%arg0: i32, %arg1: memref<20x32xf32, #tpu.memory_space<vmem>>, %arg2: memref<4x20xf32, #tpu.memory_space<vmem>>, %arg3: memref<4x1xf32, #tpu.memory_space<vmem>>, %arg4: memref<4x32xf32, #tpu.memory_space<vmem>>) attributes {dimension_semantics = [#tpu.dimension_semantics<arbitrary>], iteration_bounds = array<i64: 1>, scalar_prefetch = 0 : i64, scratch_operands = 0 : i64, tpu.core_type = #tpu.core_type<tc>, window_params = [{pipeline_mode = #tpu.pipeline_mode<synchronous>, transform_indices = @transform_0, window_bounds = array<i64: 20, 32>}, {pipeline_mode = #tpu.pipeline_mode<synchronous>, transform_indices = @transform_1, window_bounds = array<i64: 4, 20>}, {pipeline_mode = #tpu.pipeline_mode<synchronous>, transform_indices = @transform_2, window_bounds = array<i64: 4, 1>}, {pipeline_mode = #tpu.pipeline_mode<synchronous>, transform_indices = @transform_3, window_bounds = array<i64: 4, 32>}]} {
    %c0 = arith.constant 0 : index
    %c0_0 = arith.constant 0 : index
    %0 = vector.load %arg2[%c0, %c0_0] : memref<4x20xf32, #tpu.memory_space<vmem>>, vector<4x20xf32>
    %c0_1 = arith.constant 0 : index
    %c0_2 = arith.constant 0 : index
    %1 = vector.load %arg1[%c0_1, %c0_2] : memref<20x32xf32, #tpu.memory_space<vmem>>, vector<20x32xf32>
    %cst = arith.constant dense<0.000000e+00> : vector<4x32xf32>
    %2 = tpu.matmul %0, %1, %cst {dimension_numbers = #tpu.dot_dimension_numbers<[1], [0], [0], [1], [0, 0, 1, 1], [], []>} : vector<4x20xf32>, vector<20x32xf32>, vector<4x32xf32> -> vector<4x32xf32>
    %c0_3 = arith.constant 0 : index
    %c0_4 = arith.constant 0 : index
    %3 = vector.load %arg3[%c0_3, %c0_4] : memref<4x1xf32, #tpu.memory_space<vmem>>, vector<4x1xf32>
    %4 = vector.broadcast %3 : vector<4x1xf32> to vector<4x32xf32>
    %5 = arith.addf %2, %4 : vector<4x32xf32>
    %c0_5 = arith.constant 0 : index
    %c0_6 = arith.constant 0 : index
    %6 = vector.load %arg4[%c0_5, %c0_6] : memref<4x32xf32, #tpu.memory_space<vmem>>, vector<4x32xf32>
    tpu.vector_store %arg4[%c0_5, %c0_6], %5 {strides = array<i32>} : memref<4x32xf32, #tpu.memory_space<vmem>>, vector<4x32xf32>,
    return
  }
  func.func @transform_0(%arg0: i32) -> (i32, i32) {
    %c0_i32 = arith.constant 0 : i32
    %c0_i32_0 = arith.constant 0 : i32
    %c0_i32_1 = arith.constant 0 : i32
    return %c0_i32, %c0_i32_0 : i32, i32
  }
  func.func @transform_1(%arg0: i32) -> (i32, i32) {
    %c0_i32 = arith.constant 0 : i32
    %c0_i32_0 = arith.constant 0 : i32
    %c0_i32_1 = arith.constant 0 : i32
    return %c0_i32, %c0_i32_0 : i32, i32
  }
  func.func @transform_2(%arg0: i32) -> (i32, i32) {
    %c0_i32 = arith.constant 0 : i32
    %c0_i32_0 = arith.constant 0 : i32
    %c0_i32_1 = arith.constant 0 : i32
    return %c0_i32, %c0_i32_0 : i32, i32
  }
  func.func @transform_3(%arg0: i32) -> (i32, i32) {
    %c0_i32 = arith.constant 0 : i32
    %c0_i32_0 = arith.constant 0 : i32
    %c0_i32_1 = arith.constant 0 : i32
    return %c0_i32, %c0_i32_0 : i32, i32
  }
}

</mosaic_0001>

<llo_original>
// kernel: _forward_single_frame.4
$region0: #{_forward_single_frame.4}
  #allocation0 [shape = 'u32[]', space=smem, size = 0x4, offset = 0x4, fixed_abs, tag = 'smem constant byte address 0x4 - core index']
  #allocation1 [shape = 'u32[144,128]{1,0:T(1,128)}', space=vmem, size = 0x12000, scoped, tag = 'internal scratch']
  %s0 = inlined_call_operand.vmem [shape: f32[8,8,8], index: 0, kind: input, shape index: {}]
  %s1 = inlined_call_operand.vmem [shape: f32[16,8], index: 1, kind: input, shape index: {}]
  %s2 = inlined_call_operand.vmem [shape: f32[8,16], index: 2, kind: input, shape index: {}]
  %s3 = inlined_call_operand.vmem [shape: f32[8,16,16], index: 3, kind: output, shape index: {0}]
  %s4 = inlined_call_operand.vmem [shape: f32[2,16,16], index: 4, kind: output, shape index: {1}]
  %5 = xla_tuple %s3, %s4
  %s6 = sld [smem:[#allocation0]]
  $region53: #{_forward_single_frame.4} parent=0
    _
  %s8 = ssub.s32 1, %s6
  %s9 = scalar_select 0, %s8, %s6
  loop: start=0, step=1, limit=4
  $region2: #{_forward_single_frame.4} parent=0 // loop_pre_header
    _
  $region3: #{_forward_single_frame.4} parent=0 // loop_header
    %s11 = sphi 0, %s15
    %p12 = scmp.ge.s32.totalorder %s11, 4
    %s21 = sphi 0, %s23
    %s24 = sphi 0, %s21
    %s25 = sphi 0, %s24
    %s41 = sphi 0, %s25
    %s45 = sphi 0, %s45
    %s47 = sphi 0, %s45
    %s48 = sphi 0, %s47
    %s62 = sphi 0, %s48
    %s66 = sphi 0, %s66
    %s68 = sphi 0, %s66
    %s69 = sphi 0, %s68
    %s83 = sphi 0, %s69
    %s89 = sphi 0, %s91
    %s92 = sphi 0, %s89
    %s93 = sphi 0, %s92
    %s109 = sphi 0, %s93
    %s115 = sphi 0, %s117
    %s118 = sphi 0, %s115
    %s119 = sphi 0, %s118
    %s135 = sphi 0, %s119
  $region4: #{_forward_single_frame.4} parent=0 // loop_header_branch
    %14 = sbr.rel (%p12) target = $region8
  $region5: #{_forward_single_frame.4} parent=0 // loop_body
    %s16 = ssub.s32 %s11, 1
    %s17 = ssub.s32 %s11, 2
    %s18 = sadd.s32 %s11, 1
    %s19 = ssub.s32 %s11, %s18
    %p20 = scmp.eq.s32.totalorder %s19, 0
    %s22 = sadd.s32 %s21, 1
    %s23 = scalar_select %p20, %s21, %s22
    %p26 = pneg %p20
    %p27 = scmp.eq.s32.totalorder %s11, 1
    %p28 = por %p26, %p27
    %p29 = scmp.ne.s32.totalorder %s21, %s24
    %p30 = scmp.eq.s32.totalorder %s11, 0
    %p31 = por %p29, %p30
    %p32 = scmp.ne.s32.totalorder %s21, %s24
    %p33 = scmp.eq.s32.totalorder %s16, 1
    %p34 = por %p32, %p33
    %p35 = scmp.ne.s32.totalorder %s24, %s25
    %p36 = scmp.eq.s32.totalorder %s16, 0
    %p37 = por %p35, %p36
    %p38 = scmp.ne.s32.totalorder %s24, %s25
    %p39 = scmp.eq.s32.totalorder %s17, 1
    %p40 = por %p38, %p39
    %p42 = scmp.ne.s32.totalorder %s25, %s41
    %p43 = scmp.eq.s32.totalorder %s17, 0
    %p44 = por %p42, %p43
    %s46 = sadd.s32 %s45, 1
    %p49 = scmp.eq.s32.totalorder %s11, 1
    %p50 = scmp.ne.s32.totalorder %s45, %s47
    %p51 = scmp.eq.s32.totalorder %s11, 0
    %p52 = por %p50, %p51
    %p53 = scmp.ne.s32.totalorder %s45, %s47
    %p54 = scmp.eq.s32.totalorder %s16, 1
    %p55 = por %p53, %p54
    %p56 = scmp.ne.s32.totalorder %s47, %s48
    %p57 = scmp.eq.s32.totalorder %s16, 0
    %p58 = por %p56, %p57
    %p59 = scmp.ne.s32.totalorder %s47, %s48
    %p60 = scmp.eq.s32.totalorder %s17, 1
    %p61 = por %p59, %p60
    %p63 = scmp.ne.s32.totalorder %s48, %s62
    %p64 = scmp.eq.s32.totalorder %s17, 0
    %p65 = por %p63, %p64
    %s67 = sadd.s32 %s66, 1
    %p70 = scmp.eq.s32.totalorder %s11, 1
    %p71 = scmp.ne.s32.totalorder %s66, %s68
    %p72 = scmp.eq.s32.totalorder %s11, 0
    %p73 = por %p71, %p72
    %p74 = scmp.ne.s32.totalorder %s66, %s68
    %p75 = scmp.eq.s32.totalorder %s16, 1
    %p76 = por %p74, %p75
    %p77 = scmp.ne.s32.totalorder %s68, %s69
    %p78 = scmp.eq.s32.totalorder %s16, 0
    %p79 = por %p77, %p78
    %p80 = scmp.ne.s32.totalorder %s68, %s69
    %p81 = scmp.eq.s32.totalorder %s17, 1
    %p82 = por %p80, %p81
    %p84 = scmp.ne.s32.totalorder %s69, %s83
    %p85 = scmp.eq.s32.totalorder %s17, 0
    %p86 = por %p84, %p85
    %s87 = ssub.s32 %s11, %s18
    %p88 = scmp.eq.s32.totalorder %s87, 0
    %s90 = sadd.s32 %s89, 1
    %s91 = scalar_select %p88, %s89, %s90
    %p94 = pneg %p88
    %p95 = scmp.eq.s32.totalorder %s11, 1
    %p96 = por %p94, %p95
    %p97 = scmp.ne.s32.totalorder %s89, %s92
    %p98 = scmp.eq.s32.totalorder %s11, 0
    %p99 = por %p97, %p98
    %p100 = scmp.ne.s32.totalorder %s89, %s92
    %p101 = scmp.eq.s32.totalorder %s16, 1
    %p102 = por %p100, %p101
    %p103 = scmp.ne.s32.totalorder %s92, %s93
    %p104 = scmp.eq.s32.totalorder %s16, 0
    %p105 = por %p103, %p104
    %p106 = scmp.ne.s32.totalorder %s92, %s93
    %p107 = scmp.eq.s32.totalorder %s17, 1
    %p108 = por %p106, %p107
    %p110 = scmp.ne.s32.totalorder %s93, %s109
    %p111 = scmp.eq.s32.totalorder %s17, 0
    %p112 = por %p110, %p111
    %s113 = ssub.s32 %s11, %s18
    %p114 = scmp.eq.s32.totalorder %s113, 0
    %s116 = sadd.s32 %s115, 1
    %s117 = scalar_select %p114, %s115, %s116
    %p120 = pneg %p114
    %p121 = scmp.eq.s32.totalorder %s11, 1
    %p122 = por %p120, %p121
    %p123 = scmp.ne.s32.totalorder %s115, %s118
    %p124 = scmp.eq.s32.totalorder %s11, 0
    %p125 = por %p123, %p124
    %p126 = scmp.ne.s32.totalorder %s115, %s118
    %p127 = scmp.eq.s32.totalorder %s16, 1
    %p128 = por %p126, %p127
    %p129 = scmp.ne.s32.totalorder %s118, %s119
    %p130 = scmp.eq.s32.totalorder %s16, 0
    %p131 = por %p129, %p130
    %p132 = scmp.ne.s32.totalorder %s118, %s119
    %p133 = scmp.eq.s32.totalorder %s17, 1
    %p134 = por %p132, %p133
    %p136 = scmp.ne.s32.totalorder %s119, %s135
    %p137 = scmp.eq.s32.totalorder %s17, 0
    %p138 = por %p136, %p137
    %p139 = scmp.le.s32.totalorder 1, %s11
    %p140 = scmp.lt.s32.totalorder %s11, 3
    %p141 = pnand %p139, %p140
    %p142 = pneg %p141
    // Predicated region
    $region9: #{_forward_single_frame.4} parent=5 // pred_check
      _
    $region10: #{_forward_single_frame.4} parent=5 // pred_check_branch
      %144 = sbr.rel (%p141) target = $region12
    $region11: #{_forward_single_frame.4} parent=5 // pred_region
      %s145 = ssub.s32 %s11, 1
      // Predicated region
      $region13: #{_forward_single_frame.4} parent=11 // pred_check
        %p146 = pneg %p58
      $region14: #{_forward_single_frame.4} parent=11 // pred_check_branch
        %148 = sbr.rel (%p146) target = $region16
      $region15: #{_forward_single_frame.4} parent=11 // pred_region
        _
      $region16: #{_forward_single_frame.4} parent=11 // pred_fallthru
        _
      // Predicated region
      $region17: #{_forward_single_frame.4} parent=11 // pred_check
        %p149 = pneg %p79
      $region18: #{_forward_single_frame.4} parent=11 // pred_check_branch
        %151 = sbr.rel (%p149) target = $region20
      $region19: #{_forward_single_frame.4} parent=11 // pred_region
        _
      $region20: #{_forward_single_frame.4} parent=11 // pred_fallthru
        _
    $region12: #{_forward_single_frame.4} parent=5 // pred_fallthru
      _
    %p152 = scmp.lt.s32.totalorder %s11, 2
    // Predicated region
    $region21: #{_forward_single_frame.4} parent=5 // pred_check
      %p153 = pneg %p152
    $region22: #{_forward_single_frame.4} parent=5 // pred_check_branch
      %155 = sbr.rel (%p153) target = $region24
    $region23: #{_forward_single_frame.4} parent=5 // pred_region
      // Predicated region
      $region25: #{_forward_single_frame.4} parent=23 // pred_check
        %p156 = pneg %p31
      $region26: #{_forward_single_frame.4} parent=23 // pred_check_branch
        %158 = sbr.rel (%p156) target = $region28
      $region27: #{_forward_single_frame.4} parent=23 // pred_region
        %s159 = smul.u32 4, %s11
        %p160 = scmp.lt.s32.totalorder %s159, 7
        %s161 = scalar_select %p160, %s159, 7
        %s162 = smul.addr %s161, 8
        %s163 = scalar_lea.vmem %s0, %s162
        %s164 = smul.u32 4, %s11
      $region28: #{_forward_single_frame.4} parent=23 // pred_fallthru
        _
    $region24: #{_forward_single_frame.4} parent=5 // pred_fallthru
      _
    %p165 = scmp.le.s32.totalorder 1, %s11
    %p166 = scmp.lt.s32.totalorder %s11, 3
    %p167 = pnand %p165, %p166
    %p168 = pneg %p167
    // Predicated region
    $region29: #{_forward_single_frame.4} parent=5 // pred_check
      _
    $region30: #{_forward_single_frame.4} parent=5 // pred_check_branch
      %170 = sbr.rel (%p167) target = $region32
    $region31: #{_forward_single_frame.4} parent=5 // pred_region
      %s171 = ssub.s32 %s11, 1
      %s172 = smul.u32 4, %s16
      %p173 = scmp.lt.s32.totalorder %s172, 7
      %s174 = scalar_select %p173, %s172, 7
      %s175 = smul.addr %s174, 8
      %s176 = scalar_lea.vmem %s0, %s175
      %p177 = pneg %p37
      %p178 = pneg %p34
      %p179 = pneg %p58
      %p180 = pneg %p55
      %p181 = pneg %p79
      %p182 = pneg %p76
      %p183 = pneg %p105
      %p184 = pneg %p102
      %s185 = smul.u32 4, %s16
      %p186 = scmp.lt.s32.totalorder %s185, 7
      %s187 = scalar_select %p186, %s185, 7
      %s188 = smul.addr %s187, 2
      %s189 = smul.addr %s188, 8
      %s190 = scalar_lea.vmem %s3, %s189
      %p191 = pneg %p131
      %p192 = pneg %p128
      %p193 = scmp.lt.s32.totalorder %s16, 1
      %s194 = scalar_select %p193, %s16, 1
      %s195 = smul.addr %s194, 2
      %s196 = smul.addr %s195, 8
      %s197 = scalar_lea.vmem %s4, %s196
      %s198 = smul.u32 4, %s16
      %p199 = scmp.lt.s32.totalorder %s198, 7
      %s200 = scalar_select %p199, %s198, 7
      %s201 = smul.addr %s200, 8
      %s202 = scalar_lea.vmem %s0, %s201
      %s203 = smul.u32 4, %s16
      %s204 = smul.u32 4, %s16
      %p205 = scmp.lt.s32.totalorder %s204, 7
      %s206 = scalar_select %p205, %s204, 7
      %s207 = smul.addr %s206, 2
      %s208 = smul.addr %s207, 8
      %s209 = scalar_lea.vmem %s3, %s208
      %s210 = smul.u32 4, %s16
      %p211 = scmp.lt.s32.totalorder %s16, 1
      %s212 = scalar_select %p211, %s16, 1
      %s213 = smul.addr %s212, 2
      %s214 = smul.addr %s213, 8
      %s215 = scalar_lea.vmem %s4, %s214
      %v216 = vld [vmem:[%s202] sm:$0xff]
      %v217 = vld [vmem:[%s202 + $0x8] sm:$0xff]
      %v218 = vld [vmem:[%s202 + $0x10] sm:$0xff]
      %v219 = vld [vmem:[%s202 + $0x18] sm:$0xff]
      %v220 = vld [vmem:[%s2] sm:$0xff]
      %vm221 = vcmask 64512
      %v223 = vsel %vm221, %v216, 0
      %v226 = vsel %vm221, %v217, 0
      %v229 = vsel %vm221, %v218, 0
      %v232 = vsel %vm221, %v219, 0
      %234 = vmatprep.subr.mxu0 0.0
      %235 = vmatpush1.msra.mxu0 %v220
      %236 = vmatprep.subr.mxu0 0.0
      %237 = vmatpush1.msra.mxu0 0.0
      %238 = vmatprep.subr.mxu0 0.0
      %239 = vmatpush1.msra.mxu0 0.0
      %240 = vmatprep.subr.mxu0 0.0
      %241 = vmatpush1.msra.mxu0 0.0
      %242 = vmatprep.subr.mxu0 0.0
      %243 = vmatpush1.msra.mxu0 0.0
      %244 = vmatprep.subr.mxu0 0.0
      %245 = vmatpush1.msra.mxu0 0.0
      %246 = vmatprep.subr.mxu0 0.0
      %247 = vmatpush1.msra.mxu0 0.0
      %248 = vmatprep.subr.mxu0 0.0
      %249 = vmatpush1.msra.mxu0 0.0
      %250 = vmatprep.subr.mxu0 0.0
      %251 = vmatpush1.msra.mxu0 0.0
      %252 = vmatprep.subr.mxu0 0.0
      %253 = vmatpush1.msra.mxu0 0.0
      %254 = vmatprep.subr.mxu0 0.0
      %255 = vmatpush1.msra.mxu0 0.0
      %256 = vmatprep.subr.mxu0 0.0
      %257 = vmatpush1.msra.mxu0 0.0
      %258 = vmatprep.subr.mxu0 0.0
      %259 = vmatpush1.msra.mxu0 0.0
      %260 = vmatprep.subr.mxu0 0.0
      %261 = vmatpush1.msra.mxu0 0.0
      %262 = vmatprep.subr.mxu0 0.0
      %263 = vmatpush1.msra.mxu0 0.0
      %264 = vmatprep.subr.mxu0 0.0
      %265 = vmatpush1.msra.mxu0 0.0
      %266 = vmatprep.subr.mxu0 0.0
      %267 = vmatpush1.msra.mxu0 0.0
      %268 = vmatprep.subr.mxu0 0.0
      %269 = vmatpush1.msra.mxu0 0.0
      %270 = vmatprep.subr.mxu0 0.0
      %271 = vmatpush1.msra.mxu0 0.0
      %272 = vmatprep.subr.mxu0 0.0
      %273 = vmatpush1.msra.mxu0 0.0
      %274 = vmatprep.subr.mxu0 0.0
      %275 = vmatpush1.msra.mxu0 0.0
      %276 = vmatprep.subr.mxu0 0.0
      %277 = vmatpush1.msra.mxu0 0.0
      %278 = vmatprep.subr.mxu0 0.0
      %279 = vmatpush1.msra.mxu0 0.0
      %280 = vmatprep.subr.mxu0 0.0
      %281 = vmatpush1.msra.mxu0 0.0
      %282 = vmatprep.subr.mxu0 0.0
      %283 = vmatpush1.msra.mxu0 0.0
      %284 = vmatprep.subr.mxu0 0.0
      %285 = vmatpush1.msra.mxu0 0.0
      %286 = vmatprep.subr.mxu0 0.0
      %287 = vmatpush1.msra.mxu0 0.0
      %288 = vmatprep.subr.mxu0 0.0
      %289 = vmatpush1.msra.mxu0 0.0
      %290 = vmatprep.subr.mxu0 0.0
      %291 = vmatpush1.msra.mxu0 0.0
      %292 = vmatprep.subr.mxu0 0.0
      %293 = vmatpush1.msra.mxu0 0.0
      %294 = vmatprep.subr.mxu0 0.0
      %295 = vmatpush1.msra.mxu0 0.0
      %296 = vmatprep.subr.mxu0 0.0
      %297 = vmatpush1.msra.mxu0 0.0
      %298 = vmatprep.mubr.f32.mxu0 0.0
      %299 = vmatmul.mubr.f32.gmra.mrb[0].mxu0 %v223
      %v300 = vpop.f32.mrb[0].mxu0
      %v301 = vadd.f32 0.0, %v300
      %v302 = vpop.f32.mrb[0].mxu0
      %303 = vmatprep.mubr.f32.mxu0 0.0
      %304 = vmatmul.mubr.f32.gmra.mrb[0].mxu0 %v226
      %v305 = vpop.f32.mrb[0].mxu0
      %v306 = vadd.f32 0.0, %v305
      %v307 = vpop.f32.mrb[0].mxu0
      %308 = vmatprep.mubr.f32.mxu0 0.0
      %309 = vmatmul.mubr.f32.gmra.mrb[0].mxu0 %v229
      %v310 = vpop.f32.mrb[0].mxu0
      %v311 = vadd.f32 0.0, %v310
      %v312 = vpop.f32.mrb[0].mxu0
      %313 = vmatprep.mubr.f32.mxu0 0.0
      %314 = vmatmul.mubr.f32.gmra.mrb[0].mxu0 %v232
      %v315 = vpop.f32.mrb[0].mxu0
      %v316 = vadd.f32 0.0, %v315
      %v317 = vpop.f32.mrb[0].mxu0
      %318 = vdwg.mxu0
      %v319 = vld [vmem:[%s1] sm:$0xff]
      %v320 = vld [vmem:[%s1 + $0x8] sm:$0xff]
      %v322 = vsel %vm221, %v319, 0
      %v325 = vsel %vm221, %v320, 0
      %327 = vmatprep.subr.mxu0 0.0
      %328 = vmatpush1.msra.mxu0 %v301
      %329 = vmatprep.subr.mxu0 0.0
      %330 = vmatpush1.msra.mxu0 0.0
      %331 = vmatprep.subr.mxu0 0.0
      %332 = vmatpush1.msra.mxu0 0.0
      %333 = vmatprep.subr.mxu0 0.0
      %334 = vmatpush1.msra.mxu0 0.0
      %335 = vmatprep.subr.mxu0 0.0
      %336 = vmatpush1.msra.mxu0 0.0
      %337 = vmatprep.subr.mxu0 0.0
      %338 = vmatpush1.msra.mxu0 0.0
      %339 = vmatprep.subr.mxu0 0.0
      %340 = vmatpush1.msra.mxu0 0.0
      %341 = vmatprep.subr.mxu0 0.0
      %342 = vmatpush1.msra.mxu0 0.0
      %343 = vmatprep.subr.mxu0 0.0
      %344 = vmatpush1.msra.mxu0 0.0
      %345 = vmatprep.subr.mxu0 0.0
      %346 = vmatpush1.msra.mxu0 0.0
      %347 = vmatprep.subr.mxu0 0.0
      %348 = vmatpush1.msra.mxu0 0.0
      %349 = vmatprep.subr.mxu0 0.0
      %350 = vmatpush1.msra.mxu0 0.0
      %351 = vmatprep.subr.mxu0 0.0
      %352 = vmatpush1.msra.mxu0 0.0
      %353 = vmatprep.subr.mxu0 0.0
      %354 = vmatpush1.msra.mxu0 0.0
      %355 = vmatprep.subr.mxu0 0.0
      %356 = vmatpush1.msra.mxu0 0.0
      %357 = vmatprep.subr.mxu0 0.0
      %358 = vmatpush1.msra.mxu0 0.0
      %359 = vmatprep.subr.mxu0 0.0
      %360 = vmatpush1.msra.mxu0 0.0
      %361 = vmatprep.subr.mxu0 0.0
      %362 = vmatpush1.msra.mxu0 0.0
      %363 = vmatprep.subr.mxu0 0.0
      %364 = vmatpush1.msra.mxu0 0.0
      %365 = vmatprep.subr.mxu0 0.0
      %366 = vmatpush1.msra.mxu0 0.0
      %367 = vmatprep.subr.mxu0 0.0
      %368 = vmatpush1.msra.mxu0 0.0
      %369 = vmatprep.subr.mxu0 0.0
      %370 = vmatpush1.msra.mxu0 0.0
      %371 = vmatprep.subr.mxu0 0.0
      %372 = vmatpush1.msra.mxu0 0.0
      %373 = vmatprep.subr.mxu0 0.0
      %374 = vmatpush1.msra.mxu0 0.0
      %375 = vmatprep.subr.mxu0 0.0
      %376 = vmatpush1.msra.mxu0 0.0
      %377 = vmatprep.subr.mxu0 0.0
      %378 = vmatpush1.msra.mxu0 0.0
      %379 = vmatprep.subr.mxu0 0.0
      %380 = vmatpush1.msra.mxu0 0.0
      %381 = vmatprep.subr.mxu0 0.0
      %382 = vmatpush1.msra.mxu0 0.0
      %383 = vmatprep.subr.mxu0 0.0
      %384 = vmatpush1.msra.mxu0 0.0
      %385 = vmatprep.subr.mxu0 0.0
      %386 = vmatpush1.msra.mxu0 0.0
      %387 = vmatprep.subr.mxu0 0.0
      %388 = vmatpush1.msra.mxu0 0.0
      %389 = vmatprep.subr.mxu0 0.0
      %390 = vmatpush1.msra.mxu0 0.0
      %391 = vmatprep.mubr.f32.mxu0 0.0
      %392 = vmatmul.mubr.f32.gmra.mrb[0].mxu0 %v322
      %v393 = vpop.f32.mrb[0].mxu0
      %v394 = vadd.f32 0.0, %v393
      %v395 = vpop.f32.mrb[0].mxu0
      %396 = vmatprep.mubr.f32.mxu0 0.0
      %397 = vmatmul.mubr.f32.gmra.mrb[0].mxu0 %v325
      %v398 = vpop.f32.mrb[0].mxu0
      %v399 = vadd.f32 0.0, %v398
      %v400 = vpop.f32.mrb[0].mxu0
      %401 = vdwg.mxu0
      %402 = vmatprep.subr.mxu0 0.0
      %403 = vmatpush1.msra.mxu0 %v306
      %404 = vmatprep.subr.mxu0 0.0
      %405 = vmatpush1.msra.mxu0 0.0
      %406 = vmatprep.subr.mxu0 0.0
      %407 = vmatpush1.msra.mxu0 0.0
      %408 = vmatprep.subr.mxu0 0.0
      %409 = vmatpush1.msra.mxu0 0.0
      %410 = vmatprep.subr.mxu0 0.0
      %411 = vmatpush1.msra.mxu0 0.0
      %412 = vmatprep.subr.mxu0 0.0
      %413 = vmatpush1.msra.mxu0 0.0
      %414 = vmatprep.subr.mxu0 0.0
      %415 = vmatpush1.msra.mxu0 0.0
      %416 = vmatprep.subr.mxu0 0.0
      %417 = vmatpush1.msra.mxu0 0.0
      %418 = vmatprep.subr.mxu0 0.0
      %419 = vmatpush1.msra.mxu0 0.0
      %420 = vmatprep.subr.mxu0 0.0
      %421 = vmatpush1.msra.mxu0 0.0
      %422 = vmatprep.subr.mxu0 0.0
      %423 = vmatpush1.msra.mxu0 0.0
      %424 = vmatprep.subr.mxu0 0.0
      %425 = vmatpush1.msra.mxu0 0.0
      %426 = vmatprep.subr.mxu0 0.0
      %427 = vmatpush1.msra.mxu0 0.0
      %428 = vmatprep.subr.mxu0 0.0
      %429 = vmatpush1.msra.mxu0 0.0
      %430 = vmatprep.subr.mxu0 0.0
      %431 = vmatpush1.msra.mxu0 0.0
      %432 = vmatprep.subr.mxu0 0.0
      %433 = vmatpush1.msra.mxu0 0.0
      %434 = vmatprep.subr.mxu0 0.0
      %435 = vmatpush1.msra.mxu0 0.0
      %436 = vmatprep.subr.mxu0 0.0
      %437 = vmatpush1.msra.mxu0 0.0
      %438 = vmatprep.subr.mxu0 0.0
      %439 = vmatpush1.msra.mxu0 0.0
      %440 = vmatprep.subr.mxu0 0.0
      %441 = vmatpush1.msra.mxu0 0.0
      %442 = vmatprep.subr.mxu0 0.0
      %443 = vmatpush1.msra.mxu0 0.0
      %444 = vmatprep.subr.mxu0 0.0
      %445 = vmatpush1.msra.mxu0 0.0
      %446 = vmatprep.subr.mxu0 0.0
      %447 = vmatpush1.msra.mxu0 0.0
      %448 = vmatprep.subr.mxu0 0.0
      %449 = vmatpush1.msra.mxu0 0.0
      %450 = vmatprep.subr.mxu0 0.0
      %451 = vmatpush1.msra.mxu0 0.0
      %452 = vmatprep.subr.mxu0 0.0
      %453 = vmatpush1.msra.mxu0 0.0
      %454 = vmatprep.subr.mxu0 0.0
      %455 = vmatpush1.msra.mxu0 0.0
      %456 = vmatprep.subr.mxu0 0.0
      %457 = vmatpush1.msra.mxu0 0.0
      %458 = vmatprep.subr.mxu0 0.0
      %459 = vmatpush1.msra.mxu0 0.0
      %460 = vmatprep.subr.mxu0 0.0
      %461 = vmatpush1.msra.mxu0 0.0
      %462 = vmatprep.subr.mxu0 0.0
      %463 = vmatpush1.msra.mxu0 0.0
      %464 = vmatprep.subr.mxu0 0.0
      %465 = vmatpush1.msra.mxu0 0.0
      %466 = vmatprep.mubr.f32.mxu0 0.0
      %467 = vmatmul.mubr.f32.gmra.mrb[0].mxu0 %v322
      %v468 = vpop.f32.mrb[0].mxu0
      %v469 = vadd.f32 0.0, %v468
      %v470 = vpop.f32.mrb[0].mxu0
      %471 = vmatprep.mubr.f32.mxu0 0.0
      %472 = vmatmul.mubr.f32.gmra.mrb[0].mxu0 %v325
      %v473 = vpop.f32.mrb[0].mxu0
      %v474 = vadd.f32 0.0, %v473
      %v475 = vpop.f32.mrb[0].mxu0
      %476 = vdwg.mxu0
      %477 = vmatprep.subr.mxu0 0.0
      %478 = vmatpush1.msra.mxu0 %v311
      %479 = vmatprep.subr.mxu0 0.0
      %480 = vmatpush1.msra.mxu0 0.0
      %481 = vmatprep.subr.mxu0 0.0
      %482 = vmatpush1.msra.mxu0 0.0
      %483 = vmatprep.subr.mxu0 0.0
      %484 = vmatpush1.msra.mxu0 0.0
      %485 = vmatprep.subr.mxu0 0.0
      %486 = vmatpush1.msra.mxu0 0.0
      %487 = vmatprep.subr.mxu0 0.0
      %488 = vmatpush1.msra.mxu0 0.0
      %489 = vmatprep.subr.mxu0 0.0
      %490 = vmatpush1.msra.mxu0 0.0
      %491 = vmatprep.subr.mxu0 0.0
      %492 = vmatpush1.msra.mxu0 0.0
      %493 = vmatprep.subr.mxu0 0.0
      %494 = vmatpush1.msra.mxu0 0.0
      %495 = vmatprep.subr.mxu0 0.0
      %496 = vmatpush1.msra.mxu0 0.0
      %497 = vmatprep.subr.mxu0 0.0
      %498 = vmatpush1.msra.mxu0 0.0
      %499 = vmatprep.subr.mxu0 0.0
      %500 = vmatpush1.msra.mxu0 0.0
      %501 = vmatprep.subr.mxu0 0.0
      %502 = vmatpush1.msra.mxu0 0.0
      %503 = vmatprep.subr.mxu0 0.0
      %504 = vmatpush1.msra.mxu0 0.0
      %505 = vmatprep.subr.mxu0 0.0
      %506 = vmatpush1.msra.mxu0 0.0
      %507 = vmatprep.subr.mxu0 0.0
      %508 = vmatpush1.msra.mxu0 0.0
      %509 = vmatprep.subr.mxu0 0.0
      %510 = vmatpush1.msra.mxu0 0.0
      %511 = vmatprep.subr.mxu0 0.0
      %512 = vmatpush1.msra.mxu0 0.0
      %513 = vmatprep.subr.mxu0 0.0
      %514 = vmatpush1.msra.mxu0 0.0
      %515 = vmatprep.subr.mxu0 0.0
      %516 = vmatpush1.msra.mxu0 0.0
      %517 = vmatprep.subr.mxu0 0.0
      %518 = vmatpush1.msra.mxu0 0.0
      %519 = vmatprep.subr.mxu0 0.0
      %520 = vmatpush1.msra.mxu0 0.0
      %521 = vmatprep.subr.mxu0 0.0
      %522 = vmatpush1.msra.mxu0 0.0
      %523 = vmatprep.subr.mxu0 0.0
      %524 = vmatpush1.msra.mxu0 0.0
      %525 = vmatprep.subr.mxu0 0.0
      %526 = vmatpush1.msra.mxu0 0.0
      %527 = vmatprep.subr.mxu0 0.0
      %528 = vmatpush1.msra.mxu0 0.0
      %529 = vmatprep.subr.mxu0 0.0
      %530 = vmatpush1.msra.mxu0 0.0
      %531 = vmatprep.subr.mxu0 0.0
      %532 = vmatpush1.msra.mxu0 0.0
      %533 = vmatprep.subr.mxu0 0.0
      %534 = vmatpush1.msra.mxu0 0.0
      %535 = vmatprep.subr.mxu0 0.0
      %536 = vmatpush1.msra.mxu0 0.0
      %537 = vmatprep.subr.mxu0 0.0
      %538 = vmatpush1.msra.mxu0 0.0
      %539 = vmatprep.subr.mxu0 0.0
      %540 = vmatpush1.msra.mxu0 0.0
      %541 = vmatprep.mubr.f32.mxu0 0.0
      %542 = vmatmul.mubr.f32.gmra.mrb[0].mxu0 %v322
      %v543 = vpop.f32.mrb[0].mxu0
      %v544 = vadd.f32 0.0, %v543
      %v545 = vpop.f32.mrb[0].mxu0
      %546 = vmatprep.mubr.f32.mxu0 0.0
      %547 = vmatmul.mubr.f32.gmra.mrb[0].mxu0 %v325
      %v548 = vpop.f32.mrb[0].mxu0
      %v549 = vadd.f32 0.0, %v548
      %v550 = vpop.f32.mrb[0].mxu0
      %551 = vdwg.mxu0
      %552 = vmatprep.subr.mxu0 0.0
      %553 = vmatpush1.msra.mxu0 %v316
      %554 = vmatprep.subr.mxu0 0.0
      %555 = vmatpush1.msra.mxu0 0.0
      %556 = vmatprep.subr.mxu0 0.0
      %557 = vmatpush1.msra.mxu0 0.0
      %558 = vmatprep.subr.mxu0 0.0
      %559 = vmatpush1.msra.mxu0 0.0
      %560 = vmatprep.subr.mxu0 0.0
      %561 = vmatpush1.msra.mxu0 0.0
      %562 = vmatprep.subr.mxu0 0.0
      %563 = vmatpush1.msra.mxu0 0.0
      %564 = vmatprep.subr.mxu0 0.0
      %565 = vmatpush1.msra.mxu0 0.0
      %566 = vmatprep.subr.mxu0 0.0
      %567 = vmatpush1.msra.mxu0 0.0
      %568 = vmatprep.subr.mxu0 0.0
      %569 = vmatpush1.msra.mxu0 0.0
      %570 = vmatprep.subr.mxu0 0.0
      %571 = vmatpush1.msra.mxu0 0.0
      %572 = vmatprep.subr.mxu0 0.0
      %573 = vmatpush1.msra.mxu0 0.0
      %574 = vmatprep.subr.mxu0 0.0
      %575 = vmatpush1.msra.mxu0 0.0
      %576 = vmatprep.subr.mxu0 0.0
      %577 = vmatpush1.msra.mxu0 0.0
      %578 = vmatprep.subr.mxu0 0.0
      %579 = vmatpush1.msra.mxu0 0.0
      %580 = vmatprep.subr.mxu0 0.0
      %581 = vmatpush1.msra.mxu0 0.0
      %582 = vmatprep.subr.mxu0 0.0
      %583 = vmatpush1.msra.mxu0 0.0
      %584 = vmatprep.subr.mxu0 0.0
      %585 = vmatpush1.msra.mxu0 0.0
      %586 = vmatprep.subr.mxu0 0.0
      %587 = vmatpush1.msra.mxu0 0.0
      %588 = vmatprep.subr.mxu0 0.0
      %589 = vmatpush1.msra.mxu0 0.0
      %590 = vmatprep.subr.mxu0 0.0
      %591 = vmatpush1.msra.mxu0 0.0
      %592 = vmatprep.subr.mxu0 0.0
      %593 = vmatpush1.msra.mxu0 0.0
      %594 = vmatprep.subr.mxu0 0.0
      %595 = vmatpush1.msra.mxu0 0.0
      %596 = vmatprep.subr.mxu0 0.0
      %597 = vmatpush1.msra.mxu0 0.0
      %598 = vmatprep.subr.mxu0 0.0
      %599 = vmatpush1.msra.mxu0 0.0
      %600 = vmatprep.subr.mxu0 0.0
      %601 = vmatpush1.msra.mxu0 0.0
      %602 = vmatprep.subr.mxu0 0.0
      %603 = vmatpush1.msra.mxu0 0.0
      %604 = vmatprep.subr.mxu0 0.0
      %605 = vmatpush1.msra.mxu0 0.0
      %606 = vmatprep.subr.mxu0 0.0
      %607 = vmatpush1.msra.mxu0 0.0
      %608 = vmatprep.subr.mxu0 0.0
      %609 = vmatpush1.msra.mxu0 0.0
      %610 = vmatprep.subr.mxu0 0.0
      %611 = vmatpush1.msra.mxu0 0.0
      %612 = vmatprep.subr.mxu0 0.0
      %613 = vmatpush1.msra.mxu0 0.0
      %614 = vmatprep.subr.mxu0 0.0
      %615 = vmatpush1.msra.mxu0 0.0
      %616 = vmatprep.mubr.f32.mxu0 0.0
      %617 = vmatmul.mubr.f32.gmra.mrb[0].mxu0 %v322
      %v618 = vpop.f32.mrb[0].mxu0
      %v619 = vadd.f32 0.0, %v618
      %v620 = vpop.f32.mrb[0].mxu0
      %621 = vmatprep.mubr.f32.mxu0 0.0
      %622 = vmatmul.mubr.f32.gmra.mrb[0].mxu0 %v325
      %v623 = vpop.f32.mrb[0].mxu0
      %v624 = vadd.f32 0.0, %v623
      %v625 = vpop.f32.mrb[0].mxu0
      %626 = vdwg.mxu0
      %vm627 = vcmask 130048
      %628 = vst.msk [vmem:[%s209] sm:$0xff] %vm627, %v394
      %629 = vst.msk [vmem:[%s209 + $0x8] sm:$0xff] %vm627, %v399
      %630 = vst.msk [vmem:[%s209 + $0x10] sm:$0xff] %vm627, %v469
      %631 = vst.msk [vmem:[%s209 + $0x18] sm:$0xff] %vm627, %v474
      %632 = vst.msk [vmem:[%s209 + $0x20] sm:$0xff] %vm627, %v544
      %633 = vst.msk [vmem:[%s209 + $0x28] sm:$0xff] %vm627, %v549
      %634 = vst.msk [vmem:[%s209 + $0x30] sm:$0xff] %vm627, %v619
      %635 = vst.msk [vmem:[%s209 + $0x38] sm:$0xff] %vm627, %v624
      %v636 = vmax.f32 %v394, %v469
      %v637 = vmax.f32 %v399, %v474
      %v638 = vmin.f32 %v394, %v469
      %v639 = vmin.f32 %v399, %v474
      %v640 = vmax.f32 %v544, %v619
      %v641 = vmax.f32 %v549, %v624
      %v642 = vmin.f32 %v544, %v619
      %v643 = vmin.f32 %v549, %v624
      %v644 = vmax.f32 %v636, %v640
      %v645 = vmax.f32 %v637, %v641
      %v646 = vmin.f32 %v636, %v640
      %v647 = vmin.f32 %v637, %v641
      %vm648 = vcmp.ge.f32.partialorder %v636, %v640
      %vm649 = vcmp.ge.f32.partialorder %v637, %v641
      %v650 = vsel %vm648, %v638, %v642
      %v651 = vsel %vm649, %v639, %v643
      %v652 = vmax.f32 %v646, %v650
      %v653 = vmax.f32 %v647, %v651
      %v654 = vsub.f32 %v652, %v644
      %v655 = vsub.f32 %v653, %v645
      %656 = vst.msk [vmem:[%s215] sm:$0xff] %vm627, %v654
      %657 = vst.msk [vmem:[%s215 + $0x8] sm:$0xff] %vm627, %v655
      %s658 = smul.u32 4, %s16
      %p659 = scmp.lt.s32.totalorder %s658, 7
      %s660 = scalar_select %p659, %s658, 7
      %s661 = smul.addr %s660, 2
      %s662 = smul.addr %s661, 8
      %s663 = scalar_lea.vmem %s3, %s662
      %p664 = scmp.lt.s32.totalorder %s16, 1
      %s665 = scalar_select %p664, %s16, 1
      %s666 = smul.addr %s665, 2
      %s667 = smul.addr %s666, 8
      %s668 = scalar_lea.vmem %s4, %s667
      // Predicated region
      $region33: #{_forward_single_frame.4} parent=31 // pred_check
        %p669 = pneg %p102
      $region34: #{_forward_single_frame.4} parent=31 // pred_check_branch
        %671 = sbr.rel (%p669) target = $region36
      $region35: #{_forward_single_frame.4} parent=31 // pred_region
        %s672 = smul.u32 4, %s16
      $region36: #{_forward_single_frame.4} parent=31 // pred_fallthru
        _
      // Predicated region
      $region37: #{_forward_single_frame.4} parent=31 // pred_check
        %p673 = pneg %p128
      $region38: #{_forward_single_frame.4} parent=31 // pred_check_branch
        %675 = sbr.rel (%p673) target = $region40
      $region39: #{_forward_single_frame.4} parent=31 // pred_region
        _
      $region40: #{_forward_single_frame.4} parent=31 // pred_fallthru
        _
    $region32: #{_forward_single_frame.4} parent=5 // pred_fallthru
      _
    %p676 = scmp.le.s32.totalorder 2, %s11
    // Predicated region
    $region41: #{_forward_single_frame.4} parent=5 // pred_check
      %p677 = pneg %p676
    $region42: #{_forward_single_frame.4} parent=5 // pred_check_branch
      %679 = sbr.rel (%p677) target = $region44
    $region43: #{_forward_single_frame.4} parent=5 // pred_region
      %s680 = ssub.s32 %s11, 2
      // Predicated region
      $region45: #{_forward_single_frame.4} parent=43 // pred_check
        %p681 = pneg %p108
      $region46: #{_forward_single_frame.4} parent=43 // pred_check_branch
        %683 = sbr.rel (%p681) target = $region48
      $region47: #{_forward_single_frame.4} parent=43 // pred_region
        %s684 = smul.u32 4, %s17
        %p685 = scmp.lt.s32.totalorder %s684, 7
        %s686 = scalar_select %p685, %s684, 7
        %s687 = smul.addr %s686, 2
        %s688 = smul.addr %s687, 8
        %s689 = scalar_lea.vmem %s3, %s688
      $region48: #{_forward_single_frame.4} parent=43 // pred_fallthru
        _
      // Predicated region
      $region49: #{_forward_single_frame.4} parent=43 // pred_check
        %p690 = pneg %p134
      $region50: #{_forward_single_frame.4} parent=43 // pred_check_branch
        %692 = sbr.rel (%p690) target = $region52
      $region51: #{_forward_single_frame.4} parent=43 // pred_region
        %p693 = scmp.lt.s32.totalorder %s17, 1
        %s694 = scalar_select %p693, %s17, 1
        %s695 = smul.addr %s694, 2
        %s696 = smul.addr %s695, 8
        %s697 = scalar_lea.vmem %s4, %s696
      $region52: #{_forward_single_frame.4} parent=43 // pred_fallthru
        _
    $region44: #{_forward_single_frame.4} parent=5 // pred_fallthru
      _
  $region6: #{_forward_single_frame.4} parent=0 // loop_footer
    %s15 = sadd.s32 1, %s11
  $region7: #{_forward_single_frame.4} parent=0 // loop_footer_branch
    %10 = sbr.rel target = $region3
  $region8: #{_forward_single_frame.4} parent=0 // loop_exit
    _

// kernel: _forward_single_frame.5
$region0: #{_forward_single_frame.5}
  #allocation0 [shape = 'u32[]', space=smem, size = 0x4, offset = 0x4, fixed_abs, tag = 'smem constant byte address 0x4 - core index']
  #allocation1 [shape = 'u32[144,128]{1,0:T(1,128)}', space=vmem, size = 0x12000, scoped, tag = 'internal scratch']
  %s0 = inlined_call_operand.vmem [shape: f32[20,8], index: 0, kind: input, shape index: {}]
  %s1 = inlined_call_operand.vmem [shape: f32[4,20], index: 1, kind: input, shape index: {}]
  %s2 = inlined_call_operand.vmem [shape: f32[4,1], index: 2, kind: input, shape index: {}]
  %s3 = inlined_call_operand.vmem [shape: f32[4,8], index: 3, kind: output, shape index: {}]
  %s4 = sld [smem:[#allocation0]]
  $region22: #{_forward_single_frame.5} parent=0
    _
  %s6 = ssub.s32 1, %s4
  %s7 = scalar_select 0, %s6, %s4
  // Predicated region
  $region2: #{_forward_single_frame.5} parent=0 // pred_check
    _
  $region3: #{_forward_single_frame.5} parent=0 // pred_check_branch
    %9 = sbr.rel (0) target = $region5
  $region4: #{_forward_single_frame.5} parent=0 // pred_region
    _
  $region5: #{_forward_single_frame.5} parent=0 // pred_fallthru
    _
  // Predicated region
  $region6: #{_forward_single_frame.5} parent=0 // pred_check
    _
  $region7: #{_forward_single_frame.5} parent=0 // pred_check_branch
    %11 = sbr.rel (0) target = $region9
  $region8: #{_forward_single_frame.5} parent=0 // pred_region
    _
  $region9: #{_forward_single_frame.5} parent=0 // pred_fallthru
    _
  // Predicated region
  $region10: #{_forward_single_frame.5} parent=0 // pred_check
    _
  $region11: #{_forward_single_frame.5} parent=0 // pred_check_branch
    %13 = sbr.rel (0) target = $region13
  $region12: #{_forward_single_frame.5} parent=0 // pred_region
    _
  $region13: #{_forward_single_frame.5} parent=0 // pred_fallthru
    _
  %v14 = vld [vmem:[%s1] sm:$0xf]
  %v15 = vld [vmem:[%s0] sm:$0xff]
  %v16 = vld [vmem:[%s0 + $0x8] sm:$0xff]
  %v17 = vld [vmem:[%s0 + $0x10] sm:$0xf]
  %v18 = vld [vmem:[%s2] sm:$0xf]
  %20 = vset.pattern.permute.xlu0 0
  %21 = vperm.xlu0 %20, %v18
  %v22 = vpop.permute.xlu0 %21
  %vm24 = vcmask 162816
  %v26 = vsel %vm24, %v14, 0
  %vm28 = vcmask 1043456
  %v30 = vsel %vm28, %v17, 0
  %32 = vmatprep.subr.mxu0 0.0
  %33 = vmatpush1.msra.mxu0 %v15
  %34 = vmatprep.subr.mxu0 0.0
  %35 = vmatpush1.msra.mxu0 %v16
  %36 = vmatprep.subr.mxu0 0.0
  %37 = vmatpush1.msra.mxu0 %v30
  %38 = vmatprep.subr.mxu0 0.0
  %39 = vmatpush1.msra.mxu0 0.0
  %40 = vmatprep.subr.mxu0 0.0
  %41 = vmatpush1.msra.mxu0 0.0
  %42 = vmatprep.subr.mxu0 0.0
  %43 = vmatpush1.msra.mxu0 0.0
  %44 = vmatprep.subr.mxu0 0.0
  %45 = vmatpush1.msra.mxu0 0.0
  %46 = vmatprep.subr.mxu0 0.0
  %47 = vmatpush1.msra.mxu0 0.0
  %48 = vmatprep.subr.mxu0 0.0
  %49 = vmatpush1.msra.mxu0 0.0
  %50 = vmatprep.subr.mxu0 0.0
  %51 = vmatpush1.msra.mxu0 0.0
  %52 = vmatprep.subr.mxu0 0.0
  %53 = vmatpush1.msra.mxu0 0.0
  %54 = vmatprep.subr.mxu0 0.0
  %55 = vmatpush1.msra.mxu0 0.0
  %56 = vmatprep.subr.mxu0 0.0
  %57 = vmatpush1.msra.mxu0 0.0
  %58 = vmatprep.subr.mxu0 0.0
  %59 = vmatpush1.msra.mxu0 0.0
  %60 = vmatprep.subr.mxu0 0.0
  %61 = vmatpush1.msra.mxu0 0.0
  %62 = vmatprep.subr.mxu0 0.0
  %63 = vmatpush1.msra.mxu0 0.0
  %64 = vmatprep.subr.mxu0 0.0
  %65 = vmatpush1.msra.mxu0 0.0
  %66 = vmatprep.subr.mxu0 0.0
  %67 = vmatpush1.msra.mxu0 0.0
  %68 = vmatprep.subr.mxu0 0.0
  %69 = vmatpush1.msra.mxu0 0.0
  %70 = vmatprep.subr.mxu0 0.0
  %71 = vmatpush1.msra.mxu0 0.0
  %72 = vmatprep.subr.mxu0 0.0
  %73 = vmatpush1.msra.mxu0 0.0
  %74 = vmatprep.subr.mxu0 0.0
  %75 = vmatpush1.msra.mxu0 0.0
  %76 = vmatprep.subr.mxu0 0.0
  %77 = vmatpush1.msra.mxu0 0.0
  %78 = vmatprep.subr.mxu0 0.0
  %79 = vmatpush1.msra.mxu0 0.0
  %80 = vmatprep.subr.mxu0 0.0
  %81 = vmatpush1.msra.mxu0 0.0
  %82 = vmatprep.subr.mxu0 0.0
  %83 = vmatpush1.msra.mxu0 0.0
  %84 = vmatprep.subr.mxu0 0.0
  %85 = vmatpush1.msra.mxu0 0.0
  %86 = vmatprep.subr.mxu0 0.0
  %87 = vmatpush1.msra.mxu0 0.0
  %88 = vmatprep.subr.mxu0 0.0
  %89 = vmatpush1.msra.mxu0 0.0
  %90 = vmatprep.subr.mxu0 0.0
  %91 = vmatpush1.msra.mxu0 0.0
  %92 = vmatprep.subr.mxu0 0.0
  %93 = vmatpush1.msra.mxu0 0.0
  %94 = vmatprep.subr.mxu0 0.0
  %95 = vmatpush1.msra.mxu0 0.0
  %96 = vmatprep.mubr.f32.mxu0 0.0
  %97 = vmatmul.mubr.f32.gmra.mrb[0].mxu0 %v26
  %v98 = vpop.f32.mrb[0].mxu0
  %v99 = vadd.f32 %v22, %v98
  %v100 = vpop.f32.mrb[0].mxu0
  %101 = vdwg.mxu0
  %vm102 = vcmask 60416
  %103 = vst.msk [vmem:[%s3] sm:$0xf] %vm102, %v99
  // Predicated region
  $region14: #{_forward_single_frame.5} parent=0 // pred_check
    _
  $region15: #{_forward_single_frame.5} parent=0 // pred_check_branch
    %105 = sbr.rel (0) target = $region17
  $region16: #{_forward_single_frame.5} parent=0 // pred_region
    _
  $region17: #{_forward_single_frame.5} parent=0 // pred_fallthru
    _
  // Predicated region
  $region18: #{_forward_single_frame.5} parent=0 // pred_check
    _
  $region19: #{_forward_single_frame.5} parent=0 // pred_check_branch
    %107 = sbr.rel (0) target = $region21
  $region20: #{_forward_single_frame.5} parent=0 // pred_region
    _
  $region21: #{_forward_single_frame.5} parent=0 // pred_fallthru
    _

// kernel: _forward_single_frame.6
$region0: #{_forward_single_frame.6}
  #allocation0 [shape = 'u32[]', space=smem, size = 0x4, offset = 0x4, fixed_abs, tag = 'smem constant byte address 0x4 - core index']
  #allocation1 [shape = 'u32[144,128]{1,0:T(1,128)}', space=vmem, size = 0x12000, scoped, tag = 'internal scratch']
  %s0 = inlined_call_operand.vmem [shape: f32[8,16,16], index: 0, kind: input, shape index: {}]
  %s1 = inlined_call_operand.vmem [shape: f32[32,16], index: 1, kind: input, shape index: {}]
  %s2 = inlined_call_operand.vmem [shape: f32[16,32], index: 2, kind: input, shape index: {}]
  %s3 = inlined_call_operand.vmem [shape: f32[8,32,32], index: 3, kind: output, shape index: {0}]
  %s4 = inlined_call_operand.vmem [shape: f32[2,32,32], index: 4, kind: output, shape index: {1}]
  %5 = xla_tuple %s3, %s4
  %s6 = sld [smem:[#allocation0]]
  $region53: #{_forward_single_frame.6} parent=0
    _
  %s8 = ssub.s32 1, %s6
  %s9 = scalar_select 0, %s8, %s6
  loop: start=0, step=1, limit=4
  $region2: #{_forward_single_frame.6} parent=0 // loop_pre_header
    _
  $region3: #{_forward_single_frame.6} parent=0 // loop_header
    %s11 = sphi 0, %s15
    %p12 = scmp.ge.s32.totalorder %s11, 4
    %s21 = sphi 0, %s23
    %s24 = sphi 0, %s21
    %s25 = sphi 0, %s24
    %s41 = sphi 0, %s25
    %s45 = sphi 0, %s45
    %s47 = sphi 0, %s45
    %s48 = sphi 0, %s47
    %s62 = sphi 0, %s48
    %s66 = sphi 0, %s66
    %s68 = sphi 0, %s66
    %s69 = sphi 0, %s68
    %s83 = sphi 0, %s69
    %s89 = sphi 0, %s91
    %s92 = sphi 0, %s89
    %s93 = sphi 0, %s92
    %s109 = sphi 0, %s93
    %s115 = sphi 0, %s117
    %s118 = sphi 0, %s115
    %s119 = sphi 0, %s118
    %s135 = sphi 0, %s119
  $region4: #{_forward_single_frame.6} parent=0 // loop_header_branch
    %14 = sbr.rel (%p12) target = $region8
  $region5: #{_forward_single_frame.6} parent=0 // loop_body
    %s16 = ssub.s32 %s11, 1
    %s17 = ssub.s32 %s11, 2
    %s18 = sadd.s32 %s11, 1
    %s19 = ssub.s32 %s11, %s18
    %p20 = scmp.eq.s32.totalorder %s19, 0
    %s22 = sadd.s32 %s21, 1
    %s23 = scalar_select %p20, %s21, %s22
    %p26 = pneg %p20
    %p27 = scmp.eq.s32.totalorder %s11, 1
    %p28 = por %p26, %p27
    %p29 = scmp.ne.s32.totalorder %s21, %s24
    %p30 = scmp.eq.s32.totalorder %s11, 0
    %p31 = por %p29, %p30
    %p32 = scmp.ne.s32.totalorder %s21, %s24
    %p33 = scmp.eq.s32.totalorder %s16, 1
    %p34 = por %p32, %p33
    %p35 = scmp.ne.s32.totalorder %s24, %s25
    %p36 = scmp.eq.s32.totalorder %s16, 0
    %p37 = por %p35, %p36
    %p38 = scmp.ne.s32.totalorder %s24, %s25
    %p39 = scmp.eq.s32.totalorder %s17, 1
    %p40 = por %p38, %p39
    %p42 = scmp.ne.s32.totalorder %s25, %s41
    %p43 = scmp.eq.s32.totalorder %s17, 0
    %p44 = por %p42, %p43
    %s46 = sadd.s32 %s45, 1
    %p49 = scmp.eq.s32.totalorder %s11, 1
    %p50 = scmp.ne.s32.totalorder %s45, %s47
    %p51 = scmp.eq.s32.totalorder %s11, 0
    %p52 = por %p50, %p51
    %p53 = scmp.ne.s32.totalorder %s45, %s47
    %p54 = scmp.eq.s32.totalorder %s16, 1
    %p55 = por %p53, %p54
    %p56 = scmp.ne.s32.totalorder %s47, %s48
    %p57 = scmp.eq.s32.totalorder %s16, 0
    %p58 = por %p56, %p57
    %p59 = scmp.ne.s32.totalorder %s47, %s48
    %p60 = scmp.eq.s32.totalorder %s17, 1
    %p61 = por %p59, %p60
    %p63 = scmp.ne.s32.totalorder %s48, %s62
    %p64 = scmp.eq.s32.totalorder %s17, 0
    %p65 = por %p63, %p64
    %s67 = sadd.s32 %s66, 1
    %p70 = scmp.eq.s32.totalorder %s11, 1
    %p71 = scmp.ne.s32.totalorder %s66, %s68
    %p72 = scmp.eq.s32.totalorder %s11, 0
    %p73 = por %p71, %p72
    %p74 = scmp.ne.s32.totalorder %s66, %s68
    %p75 = scmp.eq.s32.totalorder %s16, 1
    %p76 = por %p74, %p75
    %p77 = scmp.ne.s32.totalorder %s68, %s69
    %p78 = scmp.eq.s32.totalorder %s16, 0
    %p79 = por %p77, %p78
    %p80 = scmp.ne.s32.totalorder %s68, %s69
    %p81 = scmp.eq.s32.totalorder %s17, 1
    %p82 = por %p80, %p81
    %p84 = scmp.ne.s32.totalorder %s69, %s83
    %p85 = scmp.eq.s32.totalorder %s17, 0
    %p86 = por %p84, %p85
    %s87 = ssub.s32 %s11, %s18
    %p88 = scmp.eq.s32.totalorder %s87, 0
    %s90 = sadd.s32 %s89, 1
    %s91 = scalar_select %p88, %s89, %s90
    %p94 = pneg %p88
    %p95 = scmp.eq.s32.totalorder %s11, 1
    %p96 = por %p94, %p95
    %p97 = scmp.ne.s32.totalorder %s89, %s92
    %p98 = scmp.eq.s32.totalorder %s11, 0
    %p99 = por %p97, %p98
    %p100 = scmp.ne.s32.totalorder %s89, %s92
    %p101 = scmp.eq.s32.totalorder %s16, 1
    %p102 = por %p100, %p101
    %p103 = scmp.ne.s32.totalorder %s92, %s93
    %p104 = scmp.eq.s32.totalorder %s16, 0
    %p105 = por %p103, %p104
    %p106 = scmp.ne.s32.totalorder %s92, %s93
    %p107 = scmp.eq.s32.totalorder %s17, 1
    %p108 = por %p106, %p107
    %p110 = scmp.ne.s32.totalorder %s93, %s109
    %p111 = scmp.eq.s32.totalorder %s17, 0
    %p112 = por %p110, %p111
    %s113 = ssub.s32 %s11, %s18
    %p114 = scmp.eq.s32.totalorder %s113, 0
    %s116 = sadd.s32 %s115, 1
    %s117 = scalar_select %p114, %s115, %s116
    %p120 = pneg %p114
    %p121 = scmp.eq.s32.totalorder %s11, 1
    %p122 = por %p120, %p121
    %p123 = scmp.ne.s32.totalorder %s115, %s118
    %p124 = scmp.eq.s32.totalorder %s11, 0
    %p125 = por %p123, %p124
    %p126 = scmp.ne.s32.totalorder %s115, %s118
    %p127 = scmp.eq.s32.totalorder %s16, 1
    %p128 = por %p126, %p127
    %p129 = scmp.ne.s32.totalorder %s118, %s119
    %p130 = scmp.eq.s32.totalorder %s16, 0
    %p131 = por %p129, %p130
    %p132 = scmp.ne.s32.totalorder %s118, %s119
    %p133 = scmp.eq.s32.totalorder %s17, 1
    %p134 = por %p132, %p133
    %p136 = scmp.ne.s32.totalorder %s119, %s135
    %p137 = scmp.eq.s32.totalorder %s17, 0
    %p138 = por %p136, %p137
    %p139 = scmp.le.s32.totalorder 1, %s11
    %p140 = scmp.lt.s32.totalorder %s11, 3
    %p141 = pnand %p139, %p140
    %p142 = pneg %p141
    // Predicated region
    $region9: #{_forward_single_frame.6} parent=5 // pred_check
      _
    $region10: #{_forward_single_frame.6} parent=5 // pred_check_branch
      %144 = sbr.rel (%p141) target = $region12
    $region11: #{_forward_single_frame.6} parent=5 // pred_region
      %s145 = ssub.s32 %s11, 1
      // Predicated region
      $region13: #{_forward_single_frame.6} parent=11 // pred_check
        %p146 = pneg %p58
      $region14: #{_forward_single_frame.6} parent=11 // pred_check_branch
        %148 = sbr.rel (%p146) target = $region16
      $region15: #{_forward_single_frame.6} parent=11 // pred_region
        _
      $region16: #{_forward_single_frame.6} parent=11 // pred_fallthru
        _
      // Predicated region
      $region17: #{_forward_single_frame.6} parent=11 // pred_check
        %p149 = pneg %p79
      $region18: #{_forward_single_frame.6} parent=11 // pred_check_branch
        %151 = sbr.rel (%p149) target = $region20
      $region19: #{_forward_single_frame.6} parent=11 // pred_region
        _
      $region20: #{_forward_single_frame.6} parent=11 // pred_fallthru
        _
    $region12: #{_forward_single_frame.6} parent=5 // pred_fallthru
      _
    %p152 = scmp.lt.s32.totalorder %s11, 2
    // Predicated region
    $region21: #{_forward_single_frame.6} parent=5 // pred_check
      %p153 = pneg %p152
    $region22: #{_forward_single_frame.6} parent=5 // pred_check_branch
      %155 = sbr.rel (%p153) target = $region24
    $region23: #{_forward_single_frame.6} parent=5 // pred_region
      // Predicated region
      $region25: #{_forward_single_frame.6} parent=23 // pred_check
        %p156 = pneg %p31
      $region26: #{_forward_single_frame.6} parent=23 // pred_check_branch
        %158 = sbr.rel (%p156) target = $region28
      $region27: #{_forward_single_frame.6} parent=23 // pred_region
        %s159 = smul.u32 4, %s11
        %p160 = scmp.lt.s32.totalorder %s159, 7
        %s161 = scalar_select %p160, %s159, 7
        %s162 = smul.addr %s161, 2
        %s163 = smul.addr %s162, 8
        %s164 = scalar_lea.vmem %s0, %s163
        %s165 = smul.u32 4, %s11
      $region28: #{_forward_single_frame.6} parent=23 // pred_fallthru
        _
    $region24: #{_forward_single_frame.6} parent=5 // pred_fallthru
      _
    %p166 = scmp.le.s32.totalorder 1, %s11
    %p167 = scmp.lt.s32.totalorder %s11, 3
    %p168 = pnand %p166, %p167
    %p169 = pneg %p168
    // Predicated region
    $region29: #{_forward_single_frame.6} parent=5 // pred_check
      _
    $region30: #{_forward_single_frame.6} parent=5 // pred_check_branch
      %171 = sbr.rel (%p168) target = $region32
    $region31: #{_forward_single_frame.6} parent=5 // pred_region
      %s172 = ssub.s32 %s11, 1
      %s173 = smul.u32 4, %s16
      %p174 = scmp.lt.s32.totalorder %s173, 7
      %s175 = scalar_select %p174, %s173, 7
      %s176 = smul.addr %s175, 2
      %s177 = smul.addr %s176, 8
      %s178 = scalar_lea.vmem %s0, %s177
      %p179 = pneg %p37
      %p180 = pneg %p34
      %p181 = pneg %p58
      %p182 = pneg %p55
      %p183 = pneg %p79
      %p184 = pneg %p76
      %p185 = pneg %p105
      %p186 = pneg %p102
      %s187 = smul.u32 4, %s16
      %p188 = scmp.lt.s32.totalorder %s187, 7
      %s189 = scalar_select %p188, %s187, 7
      %s190 = smul.addr %s189, 4
      %s191 = smul.addr %s190, 8
      %s192 = scalar_lea.vmem %s3, %s191
      %p193 = pneg %p131
      %p194 = pneg %p128
      %p195 = scmp.lt.s32.totalorder %s16, 1
      %s196 = scalar_select %p195, %s16, 1
      %s197 = smul.addr %s196, 4
      %s198 = smul.addr %s197, 8
      %s199 = scalar_lea.vmem %s4, %s198
      %s200 = smul.u32 4, %s16
      %p201 = scmp.lt.s32.totalorder %s200, 7
      %s202 = scalar_select %p201, %s200, 7
      %s203 = smul.addr %s202, 2
      %s204 = smul.addr %s203, 8
      %s205 = scalar_lea.vmem %s0, %s204
      %s206 = smul.u32 4, %s16
      %s207 = smul.u32 4, %s16
      %p208 = scmp.lt.s32.totalorder %s207, 7
      %s209 = scalar_select %p208, %s207, 7
      %s210 = smul.addr %s209, 4
      %s211 = smul.addr %s210, 8
      %s212 = scalar_lea.vmem %s3, %s211
      %s213 = smul.u32 4, %s16
      %p214 = scmp.lt.s32.totalorder %s16, 1
      %s215 = scalar_select %p214, %s16, 1
      %s216 = smul.addr %s215, 4
      %s217 = smul.addr %s216, 8
      %s218 = scalar_lea.vmem %s4, %s217
      %v219 = vld [vmem:[%s205] sm:$0xff]
      %v220 = vld [vmem:[%s205 + $0x8] sm:$0xff]
      %v221 = vld [vmem:[%s205 + $0x10] sm:$0xff]
      %v222 = vld [vmem:[%s205 + $0x18] sm:$0xff]
      %v223 = vld [vmem:[%s205 + $0x20] sm:$0xff]
      %v224 = vld [vmem:[%s205 + $0x28] sm:$0xff]
      %v225 = vld [vmem:[%s205 + $0x30] sm:$0xff]
      %v226 = vld [vmem:[%s205 + $0x38] sm:$0xff]
      %v227 = vld [vmem:[%s2] sm:$0xff]
      %v228 = vld [vmem:[%s2 + $0x8] sm:$0xff]
      %vm229 = vcmask 130048
      %v231 = vsel %vm229, %v219, 0
      %v234 = vsel %vm229, %v220, 0
      %v237 = vsel %vm229, %v221, 0
      %v240 = vsel %vm229, %v222, 0
      %v243 = vsel %vm229, %v223, 0
      %v246 = vsel %vm229, %v224, 0
      %v249 = vsel %vm229, %v225, 0
      %v252 = vsel %vm229, %v226, 0
      %254 = vmatprep.subr.mxu0 0.0
      %255 = vmatpush1.msra.mxu0 %v227
      %256 = vmatprep.subr.mxu0 0.0
      %257 = vmatpush1.msra.mxu0 %v228
      %258 = vmatprep.subr.mxu0 0.0
      %259 = vmatpush1.msra.mxu0 0.0
      %260 = vmatprep.subr.mxu0 0.0
      %261 = vmatpush1.msra.mxu0 0.0
      %262 = vmatprep.subr.mxu0 0.0
      %263 = vmatpush1.msra.mxu0 0.0
      %264 = vmatprep.subr.mxu0 0.0
      %265 = vmatpush1.msra.mxu0 0.0
      %266 = vmatprep.subr.mxu0 0.0
      %267 = vmatpush1.msra.mxu0 0.0
      %268 = vmatprep.subr.mxu0 0.0
      %269 = vmatpush1.msra.mxu0 0.0
      %270 = vmatprep.subr.mxu0 0.0
      %271 = vmatpush1.msra.mxu0 0.0
      %272 = vmatprep.subr.mxu0 0.0
      %273 = vmatpush1.msra.mxu0 0.0
      %274 = vmatprep.subr.mxu0 0.0
      %275 = vmatpush1.msra.mxu0 0.0
      %276 = vmatprep.subr.mxu0 0.0
      %277 = vmatpush1.msra.mxu0 0.0
      %278 = vmatprep.subr.mxu0 0.0
      %279 = vmatpush1.msra.mxu0 0.0
      %280 = vmatprep.subr.mxu0 0.0
      %281 = vmatpush1.msra.mxu0 0.0
      %282 = vmatprep.subr.mxu0 0.0
      %283 = vmatpush1.msra.mxu0 0.0
      %284 = vmatprep.subr.mxu0 0.0
      %285 = vmatpush1.msra.mxu0 0.0
      %286 = vmatprep.subr.mxu0 0.0
      %287 = vmatpush1.msra.mxu0 0.0
      %288 = vmatprep.subr.mxu0 0.0
      %289 = vmatpush1.msra.mxu0 0.0
      %290 = vmatprep.subr.mxu0 0.0
      %291 = vmatpush1.msra.mxu0 0.0
      %292 = vmatprep.subr.mxu0 0.0
      %293 = vmatpush1.msra.mxu0 0.0
      %294 = vmatprep.subr.mxu0 0.0
      %295 = vmatpush1.msra.mxu0 0.0
      %296 = vmatprep.subr.mxu0 0.0
      %297 = vmatpush1.msra.mxu0 0.0
      %298 = vmatprep.subr.mxu0 0.0
      %299 = vmatpush1.msra.mxu0 0.0
      %300 = vmatprep.subr.mxu0 0.0
      %301 = vmatpush1.msra.mxu0 0.0
      %302 = vmatprep.subr.mxu0 0.0
      %303 = vmatpush1.msra.mxu0 0.0
      %304 = vmatprep.subr.mxu0 0.0
      %305 = vmatpush1.msra.mxu0 0.0
      %306 = vmatprep.subr.mxu0 0.0
      %307 = vmatpush1.msra.mxu0 0.0
      %308 = vmatprep.subr.mxu0 0.0
      %309 = vmatpush1.msra.mxu0 0.0
      %310 = vmatprep.subr.mxu0 0.0
      %311 = vmatpush1.msra.mxu0 0.0
      %312 = vmatprep.subr.mxu0 0.0
      %313 = vmatpush1.msra.mxu0 0.0
      %314 = vmatprep.subr.mxu0 0.0
      %315 = vmatpush1.msra.mxu0 0.0
      %316 = vmatprep.subr.mxu0 0.0
      %317 = vmatpush1.msra.mxu0 0.0
      %318 = vmatprep.mubr.f32.mxu0 0.0
      %319 = vmatmul.mubr.f32.gmra.mrb[0].mxu0 %v231
      %v320 = vpop.f32.mrb[0].mxu0
      %v321 = vadd.f32 0.0, %v320
      %v322 = vpop.f32.mrb[0].mxu0
      %323 = vmatprep.mubr.f32.mxu0 0.0
      %324 = vmatmul.mubr.f32.gmra.mrb[0].mxu0 %v234
      %v325 = vpop.f32.mrb[0].mxu0
      %v326 = vadd.f32 0.0, %v325
      %v327 = vpop.f32.mrb[0].mxu0
      %328 = vmatprep.mubr.f32.mxu0 0.0
      %329 = vmatmul.mubr.f32.gmra.mrb[0].mxu0 %v237
      %v330 = vpop.f32.mrb[0].mxu0
      %v331 = vadd.f32 0.0, %v330
      %v332 = vpop.f32.mrb[0].mxu0
      %333 = vmatprep.mubr.f32.mxu0 0.0
      %334 = vmatmul.mubr.f32.gmra.mrb[0].mxu0 %v240
      %v335 = vpop.f32.mrb[0].mxu0
      %v336 = vadd.f32 0.0, %v335
      %v337 = vpop.f32.mrb[0].mxu0
      %338 = vmatprep.mubr.f32.mxu0 0.0
      %339 = vmatmul.mubr.f32.gmra.mrb[0].mxu0 %v243
      %v340 = vpop.f32.mrb[0].mxu0
      %v341 = vadd.f32 0.0, %v340
      %v342 = vpop.f32.mrb[0].mxu0
      %343 = vmatprep.mubr.f32.mxu0 0.0
      %344 = vmatmul.mubr.f32.gmra.mrb[0].mxu0 %v246
      %v345 = vpop.f32.mrb[0].mxu0
      %v346 = vadd.f32 0.0, %v345
      %v347 = vpop.f32.mrb[0].mxu0
      %348 = vmatprep.mubr.f32.mxu0 0.0
      %349 = vmatmul.mubr.f32.gmra.mrb[0].mxu0 %v249
      %v350 = vpop.f32.mrb[0].mxu0
      %v351 = vadd.f32 0.0, %v350
      %v352 = vpop.f32.mrb[0].mxu0
      %353 = vmatprep.mubr.f32.mxu0 0.0
      %354 = vmatmul.mubr.f32.gmra.mrb[0].mxu0 %v252
      %v355 = vpop.f32.mrb[0].mxu0
      %v356 = vadd.f32 0.0, %v355
      %v357 = vpop.f32.mrb[0].mxu0
      %358 = vdwg.mxu0
      %v359 = vld [vmem:[%s1] sm:$0xff]
      %v360 = vld [vmem:[%s1 + $0x8] sm:$0xff]
      %v361 = vld [vmem:[%s1 + $0x10] sm:$0xff]
      %v362 = vld [vmem:[%s1 + $0x18] sm:$0xff]
      %v364 = vsel %vm229, %v359, 0
      %v367 = vsel %vm229, %v360, 0
      %v370 = vsel %vm229, %v361, 0
      %v373 = vsel %vm229, %v362, 0
      %375 = vmatprep.subr.mxu0 0.0
      %376 = vmatpush1.msra.mxu0 %v321
      %377 = vmatprep.subr.mxu0 0.0
      %378 = vmatpush1.msra.mxu0 %v326
      %379 = vmatprep.subr.mxu0 0.0
      %380 = vmatpush1.msra.mxu0 0.0
      %381 = vmatprep.subr.mxu0 0.0
      %382 = vmatpush1.msra.mxu0 0.0
      %383 = vmatprep.subr.mxu0 0.0
      %384 = vmatpush1.msra.mxu0 0.0
      %385 = vmatprep.subr.mxu0 0.0
      %386 = vmatpush1.msra.mxu0 0.0
      %387 = vmatprep.subr.mxu0 0.0
      %388 = vmatpush1.msra.mxu0 0.0
      %389 = vmatprep.subr.mxu0 0.0
      %390 = vmatpush1.msra.mxu0 0.0
      %391 = vmatprep.subr.mxu0 0.0
      %392 = vmatpush1.msra.mxu0 0.0
      %393 = vmatprep.subr.mxu0 0.0
      %394 = vmatpush1.msra.mxu0 0.0
      %395 = vmatprep.subr.mxu0 0.0
      %396 = vmatpush1.msra.mxu0 0.0
      %397 = vmatprep.subr.mxu0 0.0
      %398 = vmatpush1.msra.mxu0 0.0
      %399 = vmatprep.subr.mxu0 0.0
      %400 = vmatpush1.msra.mxu0 0.0
      %401 = vmatprep.subr.mxu0 0.0
      %402 = vmatpush1.msra.mxu0 0.0
      %403 = vmatprep.subr.mxu0 0.0
      %404 = vmatpush1.msra.mxu0 0.0
      %405 = vmatprep.subr.mxu0 0.0
      %406 = vmatpush1.msra.mxu0 0.0
      %407 = vmatprep.subr.mxu0 0.0
      %408 = vmatpush1.msra.mxu0 0.0
      %409 = vmatprep.subr.mxu0 0.0
      %410 = vmatpush1.msra.mxu0 0.0
      %411 = vmatprep.subr.mxu0 0.0
      %412 = vmatpush1.msra.mxu0 0.0
      %413 = vmatprep.subr.mxu0 0.0
      %414 = vmatpush1.msra.mxu0 0.0
      %415 = vmatprep.subr.mxu0 0.0
      %416 = vmatpush1.msra.mxu0 0.0
      %417 = vmatprep.subr.mxu0 0.0
      %418 = vmatpush1.msra.mxu0 0.0
      %419 = vmatprep.subr.mxu0 0.0
      %420 = vmatpush1.msra.mxu0 0.0
      %421 = vmatprep.subr.mxu0 0.0
      %422 = vmatpush1.msra.mxu0 0.0
      %423 = vmatprep.subr.mxu0 0.0
      %424 = vmatpush1.msra.mxu0 0.0
      %425 = vmatprep.subr.mxu0 0.0
      %426 = vmatpush1.msra.mxu0 0.0
      %427 = vmatprep.subr.mxu0 0.0
      %428 = vmatpush1.msra.mxu0 0.0
      %429 = vmatprep.subr.mxu0 0.0
      %430 = vmatpush1.msra.mxu0 0.0
      %431 = vmatprep.subr.mxu0 0.0
      %432 = vmatpush1.msra.mxu0 0.0
      %433 = vmatprep.subr.mxu0 0.0
      %434 = vmatpush1.msra.mxu0 0.0
      %435 = vmatprep.subr.mxu0 0.0
      %436 = vmatpush1.msra.mxu0 0.0
      %437 = vmatprep.subr.mxu0 0.0
      %438 = vmatpush1.msra.mxu0 0.0
      %439 = vmatprep.mubr.f32.mxu0 0.0
      %440 = vmatmul.mubr.f32.gmra.mrb[0].mxu0 %v364
      %v441 = vpop.f32.mrb[0].mxu0
      %v442 = vadd.f32 0.0, %v441
      %v443 = vpop.f32.mrb[0].mxu0
      %444 = vmatprep.mubr.f32.mxu0 0.0
      %445 = vmatmul.mubr.f32.gmra.mrb[0].mxu0 %v367
      %v446 = vpop.f32.mrb[0].mxu0
      %v447 = vadd.f32 0.0, %v446
      %v448 = vpop.f32.mrb[0].mxu0
      %449 = vmatprep.mubr.f32.mxu0 0.0
      %450 = vmatmul.mubr.f32.gmra.mrb[0].mxu0 %v370
      %v451 = vpop.f32.mrb[0].mxu0
      %v452 = vadd.f32 0.0, %v451
      %v453 = vpop.f32.mrb[0].mxu0
      %454 = vmatprep.mubr.f32.mxu0 0.0
      %455 = vmatmul.mubr.f32.gmra.mrb[0].mxu0 %v373
      %v456 = vpop.f32.mrb[0].mxu0
      %v457 = vadd.f32 0.0, %v456
      %v458 = vpop.f32.mrb[0].mxu0
      %459 = vdwg.mxu0
      %460 = vmatprep.subr.mxu0 0.0
      %461 = vmatpush1.msra.mxu0 %v331
      %462 = vmatprep.subr.mxu0 0.0
      %463 = vmatpush1.msra.mxu0 %v336
      %464 = vmatprep.subr.mxu0 0.0
      %465 = vmatpush1.msra.mxu0 0.0
      %466 = vmatprep.subr.mxu0 0.0
      %467 = vmatpush1.msra.mxu0 0.0
      %468 = vmatprep.subr.mxu0 0.0
      %469 = vmatpush1.msra.mxu0 0.0
      %470 = vmatprep.subr.mxu0 0.0
      %471 = vmatpush1.msra.mxu0 0.0
      %472 = vmatprep.subr.mxu0 0.0
      %473 = vmatpush1.msra.mxu0 0.0
      %474 = vmatprep.subr.mxu0 0.0
      %475 = vmatpush1.msra.mxu0 0.0
      %476 = vmatprep.subr.mxu0 0.0
      %477 = vmatpush1.msra.mxu0 0.0
      %478 = vmatprep.subr.mxu0 0.0
      %479 = vmatpush1.msra.mxu0 0.0
      %480 = vmatprep.subr.mxu0 0.0
      %481 = vmatpush1.msra.mxu0 0.0
      %482 = vmatprep.subr.mxu0 0.0
      %483 = vmatpush1.msra.mxu0 0.0
      %484 = vmatprep.subr.mxu0 0.0
      %485 = vmatpush1.msra.mxu0 0.0
      %486 = vmatprep.subr.mxu0 0.0
      %487 = vmatpush1.msra.mxu0 0.0
      %488 = vmatprep.subr.mxu0 0.0
      %489 = vmatpush1.msra.mxu0 0.0
      %490 = vmatprep.subr.mxu0 0.0
      %491 = vmatpush1.msra.mxu0 0.0
      %492 = vmatprep.subr.mxu0 0.0
      %493 = vmatpush1.msra.mxu0 0.0
      %494 = vmatprep.subr.mxu0 0.0
      %495 = vmatpush1.msra.mxu0 0.0
      %496 = vmatprep.subr.mxu0 0.0
      %497 = vmatpush1.msra.mxu0 0.0
      %498 = vmatprep.subr.mxu0 0.0
      %499 = vmatpush1.msra.mxu0 0.0
      %500 = vmatprep.subr.mxu0 0.0
      %501 = vmatpush1.msra.mxu0 0.0
      %502 = vmatprep.subr.mxu0 0.0
      %503 = vmatpush1.msra.mxu0 0.0
      %504 = vmatprep.subr.mxu0 0.0
      %505 = vmatpush1.msra.mxu0 0.0
      %506 = vmatprep.subr.mxu0 0.0
      %507 = vmatpush1.msra.mxu0 0.0
      %508 = vmatprep.subr.mxu0 0.0
      %509 = vmatpush1.msra.mxu0 0.0
      %510 = vmatprep.subr.mxu0 0.0
      %511 = vmatpush1.msra.mxu0 0.0
      %512 = vmatprep.subr.mxu0 0.0
      %513 = vmatpush1.msra.mxu0 0.0
      %514 = vmatprep.subr.mxu0 0.0
      %515 = vmatpush1.msra.mxu0 0.0
      %516 = vmatprep.subr.mxu0 0.0
      %517 = vmatpush1.msra.mxu0 0.0
      %518 = vmatprep.subr.mxu0 0.0
      %519 = vmatpush1.msra.mxu0 0.0
      %520 = vmatprep.subr.mxu0 0.0
      %521 = vmatpush1.msra.mxu0 0.0
      %522 = vmatprep.subr.mxu0 0.0
      %523 = vmatpush1.msra.mxu0 0.0
      %524 = vmatprep.mubr.f32.mxu0 0.0
      %525 = vmatmul.mubr.f32.gmra.mrb[0].mxu0 %v364
      %v526 = vpop.f32.mrb[0].mxu0
      %v527 = vadd.f32 0.0, %v526
      %v528 = vpop.f32.mrb[0].mxu0
      %529 = vmatprep.mubr.f32.mxu0 0.0
      %530 = vmatmul.mubr.f32.gmra.mrb[0].mxu0 %v367
      %v531 = vpop.f32.mrb[0].mxu0
      %v532 = vadd.f32 0.0, %v531
      %v533 = vpop.f32.mrb[0].mxu0
      %534 = vmatprep.mubr.f32.mxu0 0.0
      %535 = vmatmul.mubr.f32.gmra.mrb[0].mxu0 %v370
      %v536 = vpop.f32.mrb[0].mxu0
      %v537 = vadd.f32 0.0, %v536
      %v538 = vpop.f32.mrb[0].mxu0
      %539 = vmatprep.mubr.f32.mxu0 0.0
      %540 = vmatmul.mubr.f32.gmra.mrb[0].mxu0 %v373
      %v541 = vpop.f32.mrb[0].mxu0
      %v542 = vadd.f32 0.0, %v541
      %v543 = vpop.f32.mrb[0].mxu0
      %544 = vdwg.mxu0
      %545 = vmatprep.subr.mxu0 0.0
      %546 = vmatpush1.msra.mxu0 %v341
      %547 = vmatprep.subr.mxu0 0.0
      %548 = vmatpush1.msra.mxu0 %v346
      %549 = vmatprep.subr.mxu0 0.0
      %550 = vmatpush1.msra.mxu0 0.0
      %551 = vmatprep.subr.mxu0 0.0
      %552 = vmatpush1.msra.mxu0 0.0
      %553 = vmatprep.subr.mxu0 0.0
      %554 = vmatpush1.msra.mxu0 0.0
      %555 = vmatprep.subr.mxu0 0.0
      %556 = vmatpush1.msra.mxu0 0.0
      %557 = vmatprep.subr.mxu0 0.0
      %558 = vmatpush1.msra.mxu0 0.0
      %559 = vmatprep.subr.mxu0 0.0
      %560 = vmatpush1.msra.mxu0 0.0
      %561 = vmatprep.subr.mxu0 0.0
      %562 = vmatpush1.msra.mxu0 0.0
      %563 = vmatprep.subr.mxu0 0.0
      %564 = vmatpush1.msra.mxu0 0.0
      %565 = vmatprep.subr.mxu0 0.0
      %566 = vmatpush1.msra.mxu0 0.0
      %567 = vmatprep.subr.mxu0 0.0
      %568 = vmatpush1.msra.mxu0 0.0
      %569 = vmatprep.subr.mxu0 0.0
      %570 = vmatpush1.msra.mxu0 0.0
      %571 = vmatprep.subr.mxu0 0.0
      %572 = vmatpush1.msra.mxu0 0.0
      %573 = vmatprep.subr.mxu0 0.0
      %574 = vmatpush1.msra.mxu0 0.0
      %575 = vmatprep.subr.mxu0 0.0
      %576 = vmatpush1.msra.mxu0 0.0
      %577 = vmatprep.subr.mxu0 0.0
      %578 = vmatpush1.msra.mxu0 0.0
      %579 = vmatprep.subr.mxu0 0.0
      %580 = vmatpush1.msra.mxu0 0.0
      %581 = vmatprep.subr.mxu0 0.0
      %582 = vmatpush1.msra.mxu0 0.0
      %583 = vmatprep.subr.mxu0 0.0
      %584 = vmatpush1.msra.mxu0 0.0
      %585 = vmatprep.subr.mxu0 0.0
      %586 = vmatpush1.msra.mxu0 0.0
      %587 = vmatprep.subr.mxu0 0.0
      %588 = vmatpush1.msra.mxu0 0.0
      %589 = vmatprep.subr.mxu0 0.0
      %590 = vmatpush1.msra.mxu0 0.0
      %591 = vmatprep.subr.mxu0 0.0
      %592 = vmatpush1.msra.mxu0 0.0
      %593 = vmatprep.subr.mxu0 0.0
      %594 = vmatpush1.msra.mxu0 0.0
      %595 = vmatprep.subr.mxu0 0.0
      %596 = vmatpush1.msra.mxu0 0.0
      %597 = vmatprep.subr.mxu0 0.0
      %598 = vmatpush1.msra.mxu0 0.0
      %599 = vmatprep.subr.mxu0 0.0
      %600 = vmatpush1.msra.mxu0 0.0
      %601 = vmatprep.subr.mxu0 0.0
      %602 = vmatpush1.msra.mxu0 0.0
      %603 = vmatprep.subr.mxu0 0.0
      %604 = vmatpush1.msra.mxu0 0.0
      %605 = vmatprep.subr.mxu0 0.0
      %606 = vmatpush1.msra.mxu0 0.0
      %607 = vmatprep.subr.mxu0 0.0
      %608 = vmatpush1.msra.mxu0 0.0
      %609 = vmatprep.mubr.f32.mxu0 0.0
      %610 = vmatmul.mubr.f32.gmra.mrb[0].mxu0 %v364
      %v611 = vpop.f32.mrb[0].mxu0
      %v612 = vadd.f32 0.0, %v611
      %v613 = vpop.f32.mrb[0].mxu0
      %614 = vmatprep.mubr.f32.mxu0 0.0
      %615 = vmatmul.mubr.f32.gmra.mrb[0].mxu0 %v367
      %v616 = vpop.f32.mrb[0].mxu0
      %v617 = vadd.f32 0.0, %v616
      %v618 = vpop.f32.mrb[0].mxu0
      %619 = vmatprep.mubr.f32.mxu0 0.0
      %620 = vmatmul.mubr.f32.gmra.mrb[0].mxu0 %v370
      %v621 = vpop.f32.mrb[0].mxu0
      %v622 = vadd.f32 0.0, %v621
      %v623 = vpop.f32.mrb[0].mxu0
      %624 = vmatprep.mubr.f32.mxu0 0.0
      %625 = vmatmul.mubr.f32.gmra.mrb[0].mxu0 %v373
      %v626 = vpop.f32.mrb[0].mxu0
      %v627 = vadd.f32 0.0, %v626
      %v628 = vpop.f32.mrb[0].mxu0
      %629 = vdwg.mxu0
      %630 = vmatprep.subr.mxu0 0.0
      %631 = vmatpush1.msra.mxu0 %v351
      %632 = vmatprep.subr.mxu0 0.0
      %633 = vmatpush1.msra.mxu0 %v356
      %634 = vmatprep.subr.mxu0 0.0
      %635 = vmatpush1.msra.mxu0 0.0
      %636 = vmatprep.subr.mxu0 0.0
      %637 = vmatpush1.msra.mxu0 0.0
      %638 = vmatprep.subr.mxu0 0.0
      %639 = vmatpush1.msra.mxu0 0.0
      %640 = vmatprep.subr.mxu0 0.0
      %641 = vmatpush1.msra.mxu0 0.0
      %642 = vmatprep.subr.mxu0 0.0
      %643 = vmatpush1.msra.mxu0 0.0
      %644 = vmatprep.subr.mxu0 0.0
      %645 = vmatpush1.msra.mxu0 0.0
      %646 = vmatprep.subr.mxu0 0.0
      %647 = vmatpush1.msra.mxu0 0.0
      %648 = vmatprep.subr.mxu0 0.0
      %649 = vmatpush1.msra.mxu0 0.0
      %650 = vmatprep.subr.mxu0 0.0
      %651 = vmatpush1.msra.mxu0 0.0
      %652 = vmatprep.subr.mxu0 0.0
      %653 = vmatpush1.msra.mxu0 0.0
      %654 = vmatprep.subr.mxu0 0.0
      %655 = vmatpush1.msra.mxu0 0.0
      %656 = vmatprep.subr.mxu0 0.0
      %657 = vmatpush1.msra.mxu0 0.0
      %658 = vmatprep.subr.mxu0 0.0
      %659 = vmatpush1.msra.mxu0 0.0
      %660 = vmatprep.subr.mxu0 0.0
      %661 = vmatpush1.msra.mxu0 0.0
      %662 = vmatprep.subr.mxu0 0.0
      %663 = vmatpush1.msra.mxu0 0.0
      %664 = vmatprep.subr.mxu0 0.0
      %665 = vmatpush1.msra.mxu0 0.0
      %666 = vmatprep.subr.mxu0 0.0
      %667 = vmatpush1.msra.mxu0 0.0
      %668 = vmatprep.subr.mxu0 0.0
      %669 = vmatpush1.msra.mxu0 0.0
      %670 = vmatprep.subr.mxu0 0.0
      %671 = vmatpush1.msra.mxu0 0.0
      %672 = vmatprep.subr.mxu0 0.0
      %673 = vmatpush1.msra.mxu0 0.0
      %674 = vmatprep.subr.mxu0 0.0
      %675 = vmatpush1.msra.mxu0 0.0
      %676 = vmatprep.subr.mxu0 0.0
      %677 = vmatpush1.msra.mxu0 0.0
      %678 = vmatprep.subr.mxu0 0.0
      %679 = vmatpush1.msra.mxu0 0.0
      %680 = vmatprep.subr.mxu0 0.0
      %681 = vmatpush1.msra.mxu0 0.0
      %682 = vmatprep.subr.mxu0 0.0
      %683 = vmatpush1.msra.mxu0 0.0
      %684 = vmatprep.subr.mxu0 0.0
      %685 = vmatpush1.msra.mxu0 0.0
      %686 = vmatprep.subr.mxu0 0.0
      %687 = vmatpush1.msra.mxu0 0.0
      %688 = vmatprep.subr.mxu0 0.0
      %689 = vmatpush1.msra.mxu0 0.0
      %690 = vmatprep.subr.mxu0 0.0
      %691 = vmatpush1.msra.mxu0 0.0
      %692 = vmatprep.subr.mxu0 0.0
      %693 = vmatpush1.msra.mxu0 0.0
      %694 = vmatprep.mubr.f32.mxu0 0.0
      %695 = vmatmul.mubr.f32.gmra.mrb[0].mxu0 %v364
      %v696 = vpop.f32.mrb[0].mxu0
      %v697 = vadd.f32 0.0, %v696
      %v698 = vpop.f32.mrb[0].mxu0
      %699 = vmatprep.mubr.f32.mxu0 0.0
      %700 = vmatmul.mubr.f32.gmra.mrb[0].mxu0 %v367
      %v701 = vpop.f32.mrb[0].mxu0
      %v702 = vadd.f32 0.0, %v701
      %v703 = vpop.f32.mrb[0].mxu0
      %704 = vmatprep.mubr.f32.mxu0 0.0
      %705 = vmatmul.mubr.f32.gmra.mrb[0].mxu0 %v370
      %v706 = vpop.f32.mrb[0].mxu0
      %v707 = vadd.f32 0.0, %v706
      %v708 = vpop.f32.mrb[0].mxu0
      %709 = vmatprep.mubr.f32.mxu0 0.0
      %710 = vmatmul.mubr.f32.gmra.mrb[0].mxu0 %v373
      %v711 = vpop.f32.mrb[0].mxu0
      %v712 = vadd.f32 0.0, %v711
      %v713 = vpop.f32.mrb[0].mxu0
      %714 = vdwg.mxu0
      %vm715 = vcmask 261120
      %716 = vst.msk [vmem:[%s212] sm:$0xff] %vm715, %v442
      %717 = vst.msk [vmem:[%s212 + $0x8] sm:$0xff] %vm715, %v447
      %718 = vst.msk [vmem:[%s212 + $0x10] sm:$0xff] %vm715, %v452
      %719 = vst.msk [vmem:[%s212 + $0x18] sm:$0xff] %vm715, %v457
      %720 = vst.msk [vmem:[%s212 + $0x20] sm:$0xff] %vm715, %v527
      %721 = vst.msk [vmem:[%s212 + $0x28] sm:$0xff] %vm715, %v532
      %722 = vst.msk [vmem:[%s212 + $0x30] sm:$0xff] %vm715, %v537
      %723 = vst.msk [vmem:[%s212 + $0x38] sm:$0xff] %vm715, %v542
      %724 = vst.msk [vmem:[%s212 + $0x40] sm:$0xff] %vm715, %v612
      %725 = vst.msk [vmem:[%s212 + $0x48] sm:$0xff] %vm715, %v617
      %726 = vst.msk [vmem:[%s212 + $0x50] sm:$0xff] %vm715, %v622
      %727 = vst.msk [vmem:[%s212 + $0x58] sm:$0xff] %vm715, %v627
      %728 = vst.msk [vmem:[%s212 + $0x60] sm:$0xff] %vm715, %v697
      %729 = vst.msk [vmem:[%s212 + $0x68] sm:$0xff] %vm715, %v702
      %730 = vst.msk [vmem:[%s212 + $0x70] sm:$0xff] %vm715, %v707
      %731 = vst.msk [vmem:[%s212 + $0x78] sm:$0xff] %vm715, %v712
      %v732 = vmax.f32 %v442, %v527
      %v733 = vmax.f32 %v447, %v532
      %v734 = vmax.f32 %v452, %v537
      %v735 = vmax.f32 %v457, %v542
      %v736 = vmin.f32 %v442, %v527
      %v737 = vmin.f32 %v447, %v532
      %v738 = vmin.f32 %v452, %v537
      %v739 = vmin.f32 %v457, %v542
      %v740 = vmax.f32 %v612, %v697
      %v741 = vmax.f32 %v617, %v702
      %v742 = vmax.f32 %v622, %v707
      %v743 = vmax.f32 %v627, %v712
      %v744 = vmin.f32 %v612, %v697
      %v745 = vmin.f32 %v617, %v702
      %v746 = vmin.f32 %v622, %v707
      %v747 = vmin.f32 %v627, %v712
      %v748 = vmax.f32 %v732, %v740
      %v749 = vmax.f32 %v733, %v741
      %v750 = vmax.f32 %v734, %v742
      %v751 = vmax.f32 %v735, %v743
      %v752 = vmin.f32 %v732, %v740
      %v753 = vmin.f32 %v733, %v741
      %v754 = vmin.f32 %v734, %v742
      %v755 = vmin.f32 %v735, %v743
      %vm756 = vcmp.ge.f32.partialorder %v732, %v740
      %vm757 = vcmp.ge.f32.partialorder %v733, %v741
      %vm758 = vcmp.ge.f32.partialorder %v734, %v742
      %vm759 = vcmp.ge.f32.partialorder %v735, %v743
      %v760 = vsel %vm756, %v736, %v744
      %v761 = vsel %vm757, %v737, %v745
      %v762 = vsel %vm758, %v738, %v746
      %v763 = vsel %vm759, %v739, %v747
      %v764 = vmax.f32 %v752, %v760
      %v765 = vmax.f32 %v753, %v761
      %v766 = vmax.f32 %v754, %v762
      %v767 = vmax.f32 %v755, %v763
      %v768 = vsub.f32 %v764, %v748
      %v769 = vsub.f32 %v765, %v749
      %v770 = vsub.f32 %v766, %v750
      %v771 = vsub.f32 %v767, %v751
      %772 = vst.msk [vmem:[%s218] sm:$0xff] %vm715, %v768
      %773 = vst.msk [vmem:[%s218 + $0x8] sm:$0xff] %vm715, %v769
      %774 = vst.msk [vmem:[%s218 + $0x10] sm:$0xff] %vm715, %v770
      %775 = vst.msk [vmem:[%s218 + $0x18] sm:$0xff] %vm715, %v771
      %s776 = smul.u32 4, %s16
      %p777 = scmp.lt.s32.totalorder %s776, 7
      %s778 = scalar_select %p777, %s776, 7
      %s779 = smul.addr %s778, 4
      %s780 = smul.addr %s779, 8
      %s781 = scalar_lea.vmem %s3, %s780
      %p782 = scmp.lt.s32.totalorder %s16, 1
      %s783 = scalar_select %p782, %s16, 1
      %s784 = smul.addr %s783, 4
      %s785 = smul.addr %s784, 8
      %s786 = scalar_lea.vmem %s4, %s785
      // Predicated region
      $region33: #{_forward_single_frame.6} parent=31 // pred_check
        %p787 = pneg %p102
      $region34: #{_forward_single_frame.6} parent=31 // pred_check_branch
        %789 = sbr.rel (%p787) target = $region36
      $region35: #{_forward_single_frame.6} parent=31 // pred_region
        %s790 = smul.u32 4, %s16
      $region36: #{_forward_single_frame.6} parent=31 // pred_fallthru
        _
      // Predicated region
      $region37: #{_forward_single_frame.6} parent=31 // pred_check
        %p791 = pneg %p128
      $region38: #{_forward_single_frame.6} parent=31 // pred_check_branch
        %793 = sbr.rel (%p791) target = $region40
      $region39: #{_forward_single_frame.6} parent=31 // pred_region
        _
      $region40: #{_forward_single_frame.6} parent=31 // pred_fallthru
        _
    $region32: #{_forward_single_frame.6} parent=5 // pred_fallthru
      _
    %p794 = scmp.le.s32.totalorder 2, %s11
    // Predicated region
    $region41: #{_forward_single_frame.6} parent=5 // pred_check
      %p795 = pneg %p794
    $region42: #{_forward_single_frame.6} parent=5 // pred_check_branch
      %797 = sbr.rel (%p795) target = $region44
    $region43: #{_forward_single_frame.6} parent=5 // pred_region
      %s798 = ssub.s32 %s11, 2
      // Predicated region
      $region45: #{_forward_single_frame.6} parent=43 // pred_check
        %p799 = pneg %p108
      $region46: #{_forward_single_frame.6} parent=43 // pred_check_branch
        %801 = sbr.rel (%p799) target = $region48
      $region47: #{_forward_single_frame.6} parent=43 // pred_region
        %s802 = smul.u32 4, %s17
        %p803 = scmp.lt.s32.totalorder %s802, 7
        %s804 = scalar_select %p803, %s802, 7
        %s805 = smul.addr %s804, 4
        %s806 = smul.addr %s805, 8
        %s807 = scalar_lea.vmem %s3, %s806
      $region48: #{_forward_single_frame.6} parent=43 // pred_fallthru
        _
      // Predicated region
      $region49: #{_forward_single_frame.6} parent=43 // pred_check
        %p808 = pneg %p134
      $region50: #{_forward_single_frame.6} parent=43 // pred_check_branch
        %810 = sbr.rel (%p808) target = $region52
      $region51: #{_forward_single_frame.6} parent=43 // pred_region
        %p811 = scmp.lt.s32.totalorder %s17, 1
        %s812 = scalar_select %p811, %s17, 1
        %s813 = smul.addr %s812, 4
        %s814 = smul.addr %s813, 8
        %s815 = scalar_lea.vmem %s4, %s814
      $region52: #{_forward_single_frame.6} parent=43 // pred_fallthru
        _
    $region44: #{_forward_single_frame.6} parent=5 // pred_fallthru
      _
  $region6: #{_forward_single_frame.6} parent=0 // loop_footer
    %s15 = sadd.s32 1, %s11
  $region7: #{_forward_single_frame.6} parent=0 // loop_footer_branch
    %10 = sbr.rel target = $region3
  $region8: #{_forward_single_frame.6} parent=0 // loop_exit
    _

// kernel: _forward_single_frame.7
$region0: #{_forward_single_frame.7}
  #allocation0 [shape = 'u32[]', space=smem, size = 0x4, offset = 0x4, fixed_abs, tag = 'smem constant byte address 0x4 - core index']
  #allocation1 [shape = 'u32[144,128]{1,0:T(1,128)}', space=vmem, size = 0x12000, scoped, tag = 'internal scratch']
  %s0 = inlined_call_operand.vmem [shape: f32[20,32], index: 0, kind: input, shape index: {}]
  %s1 = inlined_call_operand.vmem [shape: f32[4,20], index: 1, kind: input, shape index: {}]
  %s2 = inlined_call_operand.vmem [shape: f32[4,1], index: 2, kind: input, shape index: {}]
  %s3 = inlined_call_operand.vmem [shape: f32[4,32], index: 3, kind: output, shape index: {}]
  %s4 = sld [smem:[#allocation0]]
  $region22: #{_forward_single_frame.7} parent=0
    _
  %s6 = ssub.s32 1, %s4
  %s7 = scalar_select 0, %s6, %s4
  // Predicated region
  $region2: #{_forward_single_frame.7} parent=0 // pred_check
    _
  $region3: #{_forward_single_frame.7} parent=0 // pred_check_branch
    %9 = sbr.rel (0) target = $region5
  $region4: #{_forward_single_frame.7} parent=0 // pred_region
    _
  $region5: #{_forward_single_frame.7} parent=0 // pred_fallthru
    _
  // Predicated region
  $region6: #{_forward_single_frame.7} parent=0 // pred_check
    _
  $region7: #{_forward_single_frame.7} parent=0 // pred_check_branch
    %11 = sbr.rel (0) target = $region9
  $region8: #{_forward_single_frame.7} parent=0 // pred_region
    _
  $region9: #{_forward_single_frame.7} parent=0 // pred_fallthru
    _
  // Predicated region
  $region10: #{_forward_single_frame.7} parent=0 // pred_check
    _
  $region11: #{_forward_single_frame.7} parent=0 // pred_check_branch
    %13 = sbr.rel (0) target = $region13
  $region12: #{_forward_single_frame.7} parent=0 // pred_region
    _
  $region13: #{_forward_single_frame.7} parent=0 // pred_fallthru
    _
  %v14 = vld [vmem:[%s1] sm:$0xf]
  %v15 = vld [vmem:[%s0] sm:$0xff]
  %v16 = vld [vmem:[%s0 + $0x8] sm:$0xff]
  %v17 = vld [vmem:[%s0 + $0x10] sm:$0xf]
  %v18 = vld [vmem:[%s2] sm:$0xf]
  %20 = vset.pattern.permute.xlu0 0
  %21 = vperm.xlu0 %20, %v18
  %v22 = vpop.permute.xlu0 %21
  %vm24 = vcmask 162816
  %v26 = vsel %vm24, %v14, 0
  %vm28 = vcmask 1043456
  %v30 = vsel %vm28, %v17, 0
  %32 = vmatprep.subr.mxu0 0.0
  %33 = vmatpush1.msra.mxu0 %v15
  %34 = vmatprep.subr.mxu0 0.0
  %35 = vmatpush1.msra.mxu0 %v16
  %36 = vmatprep.subr.mxu0 0.0
  %37 = vmatpush1.msra.mxu0 %v30
  %38 = vmatprep.subr.mxu0 0.0
  %39 = vmatpush1.msra.mxu0 0.0
  %40 = vmatprep.subr.mxu0 0.0
  %41 = vmatpush1.msra.mxu0 0.0
  %42 = vmatprep.subr.mxu0 0.0
  %43 = vmatpush1.msra.mxu0 0.0
  %44 = vmatprep.subr.mxu0 0.0
  %45 = vmatpush1.msra.mxu0 0.0
  %46 = vmatprep.subr.mxu0 0.0
  %47 = vmatpush1.msra.mxu0 0.0
  %48 = vmatprep.subr.mxu0 0.0
  %49 = vmatpush1.msra.mxu0 0.0
  %50 = vmatprep.subr.mxu0 0.0
  %51 = vmatpush1.msra.mxu0 0.0
  %52 = vmatprep.subr.mxu0 0.0
  %53 = vmatpush1.msra.mxu0 0.0
  %54 = vmatprep.subr.mxu0 0.0
  %55 = vmatpush1.msra.mxu0 0.0
  %56 = vmatprep.subr.mxu0 0.0
  %57 = vmatpush1.msra.mxu0 0.0
  %58 = vmatprep.subr.mxu0 0.0
  %59 = vmatpush1.msra.mxu0 0.0
  %60 = vmatprep.subr.mxu0 0.0
  %61 = vmatpush1.msra.mxu0 0.0
  %62 = vmatprep.subr.mxu0 0.0
  %63 = vmatpush1.msra.mxu0 0.0
  %64 = vmatprep.subr.mxu0 0.0
  %65 = vmatpush1.msra.mxu0 0.0
  %66 = vmatprep.subr.mxu0 0.0
  %67 = vmatpush1.msra.mxu0 0.0
  %68 = vmatprep.subr.mxu0 0.0
  %69 = vmatpush1.msra.mxu0 0.0
  %70 = vmatprep.subr.mxu0 0.0
  %71 = vmatpush1.msra.mxu0 0.0
  %72 = vmatprep.subr.mxu0 0.0
  %73 = vmatpush1.msra.mxu0 0.0
  %74 = vmatprep.subr.mxu0 0.0
  %75 = vmatpush1.msra.mxu0 0.0
  %76 = vmatprep.subr.mxu0 0.0
  %77 = vmatpush1.msra.mxu0 0.0
  %78 = vmatprep.subr.mxu0 0.0
  %79 = vmatpush1.msra.mxu0 0.0
  %80 = vmatprep.subr.mxu0 0.0
  %81 = vmatpush1.msra.mxu0 0.0
  %82 = vmatprep.subr.mxu0 0.0
  %83 = vmatpush1.msra.mxu0 0.0
  %84 = vmatprep.subr.mxu0 0.0
  %85 = vmatpush1.msra.mxu0 0.0
  %86 = vmatprep.subr.mxu0 0.0
  %87 = vmatpush1.msra.mxu0 0.0
  %88 = vmatprep.subr.mxu0 0.0
  %89 = vmatpush1.msra.mxu0 0.0
  %90 = vmatprep.subr.mxu0 0.0
  %91 = vmatpush1.msra.mxu0 0.0
  %92 = vmatprep.subr.mxu0 0.0
  %93 = vmatpush1.msra.mxu0 0.0
  %94 = vmatprep.subr.mxu0 0.0
  %95 = vmatpush1.msra.mxu0 0.0
  %96 = vmatprep.mubr.f32.mxu0 0.0
  %97 = vmatmul.mubr.f32.gmra.mrb[0].mxu0 %v26
  %v98 = vpop.f32.mrb[0].mxu0
  %v99 = vadd.f32 %v22, %v98
  %v100 = vpop.f32.mrb[0].mxu0
  %101 = vdwg.mxu0
  %vm102 = vcmask 257024
  %103 = vst.msk [vmem:[%s3] sm:$0xf] %vm102, %v99
  // Predicated region
  $region14: #{_forward_single_frame.7} parent=0 // pred_check
    _
  $region15: #{_forward_single_frame.7} parent=0 // pred_check_branch
    %105 = sbr.rel (0) target = $region17
  $region16: #{_forward_single_frame.7} parent=0 // pred_region
    _
  $region17: #{_forward_single_frame.7} parent=0 // pred_fallthru
    _
  // Predicated region
  $region18: #{_forward_single_frame.7} parent=0 // pred_check
    _
  $region19: #{_forward_single_frame.7} parent=0 // pred_check_branch
    %107 = sbr.rel (0) target = $region21
  $region20: #{_forward_single_frame.7} parent=0 // pred_region
    _
  $region21: #{_forward_single_frame.7} parent=0 // pred_fallthru
    _

</llo_original>
